<compile_context>
chip_gen: v6e
topology: v6e:2x2x1
jax: 0.10.0
libtpu: 0.0.40
codegen_flags: <defaults>
</compile_context>

<pallas_src>
import jax
import jax.numpy as jnp
from jax.experimental import pallas as pl
from jax.experimental.pallas import tpu as pltpu

LANE = 128      # vreg lane width (last dim)
SUBLANE = 8     # vreg sublane width (second-to-last dim)


def _round_up(n, m):
    return ((n + m - 1) // m) * m


def mlp_kernel(x_ref, w1_ref, b1_ref, w2_ref, b2_ref, o_ref):
    # Cast the x tile to the matmul dtype in-register (free: VPU has slack
    # under the MXU; avoids a separate wrapper-side cast + extra HBM pass).
    x = x_ref[...].astype(w1_ref.dtype)
    # Layer 1: (tb, D_in) @ (D_in, H) on the MXU, f32 accumulation.
    h = jnp.dot(x, w1_ref[...], preferred_element_type=jnp.float32)
    # Bias + ReLU in f32 on the VPU (f32 elementwise is safe on all generations).
    h = jnp.maximum(h + b1_ref[...], 0.0)
    # Layer 2: RHS is lane-dense (H, 128-padded); hidden cast to matmul dtype.
    y = jnp.dot(h.astype(w2_ref.dtype), w2_ref[...],
                preferred_element_type=jnp.float32)
    o_ref[...] = (y + b2_ref[...]).astype(o_ref.dtype)


def prepare_params(w1, b1, w2, b2, *, use_bf16_matmul=True):
    """One-time weight preparation (pad to lane-dense output, cast to MXU dtype).

    Call once and reuse the result across forward calls so the padding/cast
    HBM passes are not re-issued on every forward.
    """
    D_in, H = w1.shape
    H2, D_out = w2.shape
    assert H2 == H, (w1.shape, w2.shape)

    # Lane-dense output: zero-pad W2 / b2 columns up to a multiple of 128 so
    # output stores are unmasked full-lane vst (extra MXU columns are free).
    D_pad = _round_up(D_out, LANE)
    mm_dtype = jnp.bfloat16 if use_bf16_matmul else jnp.float32

    b1_p = jnp.reshape(b1, (1, H)).astype(jnp.float32)
    b2_p = jnp.zeros((1, D_pad), jnp.float32).at[:, :D_out].set(
        jnp.reshape(b2, (1, D_out)).astype(jnp.float32))
    w1_p = w1.astype(mm_dtype)
    w2_p = jnp.zeros((H, D_pad), mm_dtype).at[:, :D_out].set(w2.astype(mm_dtype))
    # TODO(synk): on v7x an fp8 weight path (MXU-native) would halve weight
    # VMEM/DMA further; kept bf16 here to preserve the validated accuracy budget.
    return {"w1": w1_p, "b1": b1_p, "w2": w2_p, "b2": b2_p, "d_out": D_out}


def mlp_regressor_forward(x, params, *, batch_tile=2048):
    """y = relu(x @ w1 + b1) @ w2 + b2, fused in a single Pallas kernel."""
    w1, b1, w2, b2 = params["w1"], params["b1"], params["w2"], params["b2"]
    D_out = params["d_out"]
    B, D_in = x.shape
    D_in2, H = w1.shape
    D_pad = w2.shape[1]
    assert D_in2 == D_in, (x.shape, w1.shape)

    # --- Batch tile selection -------------------------------------------------
    # Large tile to amortize the ~0.35 us fixed per-grid-step cost, capped by a
    # conservative VMEM budget (12 MiB: safe under v5e's 16 MiB default scoped
    # VMEM; v6e/v7x default to 32 MiB). Double-buffered x + out tiles plus
    # double-buffered resident weights must fit.
    x_row_bytes = D_in * x.dtype.itemsize
    out_row_bytes = D_pad * 4                      # f32 output tile
    weight_bytes = sum(int(p.size) * p.dtype.itemsize for p in (w1, b1, w2, b2))
    vmem_budget = 12 * 1024 * 1024
    tb_cap = max(SUBLANE,
                 (vmem_budget - 2 * weight_bytes) // (2 * (x_row_bytes + out_row_bytes)))

    tb = min(batch_tile, tb_cap, _round_up(B, SUBLANE))
    tb = max(SUBLANE, (tb // SUBLANE) * SUBLANE)
    # v7x: make sure the batch axis has >= 2 grid steps so both TensorCores
    # get work under dimension_semantics=("parallel",). No-op on v5e/v6e.
    if pl.cdiv(B, tb) < 2 and B > SUBLANE:
        tb = _round_up(pl.cdiv(B, 2), SUBLANE)
    grid = (pl.cdiv(B, tb),)                       # ragged edge handled by Pallas masks

    cost = pl.CostEstimate(
        flops=int(2 * B * (D_in * H + H * D_pad)),
        transcendentals=0,
        bytes_accessed=int(B * D_in * x.dtype.itemsize
                           + weight_bytes
                           + B * D_pad * 4),
    )

    out = pl.pallas_call(
        mlp_kernel,
        out_shape=jax.ShapeDtypeStruct((B, D_pad), jnp.float32),
        grid_spec=pl.GridSpec(
            grid=grid,
            in_specs=[
                pl.BlockSpec((tb, D_in), lambda i: (i, 0)),    # x tile (native dtype)
                pl.BlockSpec((D_in, H), lambda i: (0, 0)),     # W1 (resident)
                pl.BlockSpec((1, H), lambda i: (0, 0)),        # b1
                pl.BlockSpec((H, D_pad), lambda i: (0, 0)),    # W2 padded (resident)
                pl.BlockSpec((1, D_pad), lambda i: (0, 0)),    # b2 padded
            ],
            out_specs=pl.BlockSpec((tb, D_pad), lambda i: (i, 0)),
        ),
        compiler_params=pltpu.CompilerParams(
            dimension_semantics=("parallel",),     # batch axis shards across TCs
        ),
        cost_estimate=cost,
    )(x, w1, b1, w2, b2)

    # Strip the lane padding of the output (batch dim is already exact).
    return out[:, :D_out]


def init_params(key, input_dim, hidden_dim, output_dim):
    # Deterministic init mimicking nn.Linear default: U(-1/sqrt(fan_in), 1/sqrt(fan_in))
    k1, k2, k3, k4 = jax.random.split(key, 4)
    bound1 = 1.0 / jnp.sqrt(input_dim)
    bound2 = 1.0 / jnp.sqrt(hidden_dim)
    w1 = jax.random.uniform(k1, (input_dim, hidden_dim), jnp.float32, -bound1, bound1)
    b1 = jax.random.uniform(k2, (1, hidden_dim), jnp.float32, -bound1, bound1)
    w2 = jax.random.uniform(k3, (hidden_dim, output_dim), jnp.float32, -bound2, bound2)
    b2 = jax.random.uniform(k4, (1, output_dim), jnp.float32, -bound2, bound2)
    return w1, b1, w2, b2


if __name__ == "__main__":
    # Shapes consistent with MLPRegressor(input_dim=32, output_dim=4,
    # hidden_layers=[(1024, 'relu')]). B=256 exercises the 2-step megacore grid.
    batch, input_dim, hidden_dim, output_dim = 256, 32, 1024, 4

    key = jax.random.PRNGKey(0)
    kx, kp = jax.random.split(key)
    x = jax.random.normal(kx, (batch, input_dim), dtype=jnp.float32)
    w1, b1, w2, b2 = init_params(kp, input_dim, hidden_dim, output_dim)

    # One-time weight preparation, reused across forward calls.
    params_bf16 = prepare_params(w1, b1, w2, b2, use_bf16_matmul=True)
    params_f32 = prepare_params(w1, b1, w2, b2, use_bf16_matmul=False)

    # bf16-MXU path (default).
    y = mlp_regressor_forward(x, params_bf16)
    y = jax.block_until_ready(y)
    assert y.shape == (batch, output_dim)

    # Exact-semantics reference for the bf16 path (same casts, f32 accumulate).
    xb, w1b, w2b = (x.astype(jnp.bfloat16), w1.astype(jnp.bfloat16),
                    w2.astype(jnp.bfloat16))
    h_ref = jnp.maximum(
        jnp.dot(xb, w1b, preferred_element_type=jnp.float32) + b1, 0.0)
    ref_bf16 = jnp.dot(h_ref.astype(jnp.bfloat16), w2b,
                       preferred_element_type=jnp.float32) + b2
    assert jnp.allclose(y, ref_bf16, atol=5e-3, rtol=5e-3)

    # Full-f32 module semantics (loose tolerance because of bf16 MXU operands).
    ref_f32 = jnp.maximum(x @ w1 + b1, 0.0) @ w2 + b2
    assert jnp.allclose(y, ref_f32, atol=3e-2, rtol=3e-2)

    # Pure-f32 kernel path matches the PyTorch module exactly.
    y32 = jax.block_until_ready(mlp_regressor_forward(x, params_f32))
    assert jnp.allclose(y32, ref_f32, atol=1e-5, rtol=1e-5)

    # Ragged batch (B not a multiple of the tile): exercises Pallas edge masking.
    y_rag = jax.block_until_ready(mlp_regressor_forward(x[:37], params_f32))
    assert jnp.allclose(y_rag, ref_f32[:37], atol=1e-5, rtol=1e-5)

    print("KERNEL_OK")
</pallas_src>

<mosaic_0001>
module attributes {stable_mosaic.version = 11 : i64} {
  func.func @mlp_kernel(%arg0: i32, %arg1: memref<128x32xf32, #tpu.memory_space<vmem>>, %arg2: memref<32x1024xbf16, #tpu.memory_space<vmem>>, %arg3: memref<1x1024xf32, #tpu.memory_space<vmem>>, %arg4: memref<1024x128xbf16, #tpu.memory_space<vmem>>, %arg5: memref<1x128xf32, #tpu.memory_space<vmem>>, %arg6: memref<128x128xf32, #tpu.memory_space<vmem>>) attributes {dimension_semantics = [#tpu.dimension_semantics<parallel>], iteration_bounds = array<i64: 2>, scalar_prefetch = 0 : i64, scratch_operands = 0 : i64, tpu.core_type = #tpu.core_type<tc>, window_params = [{transform_indices = @transform_0, window_bounds = array<i64: 128, 32>}, {pipeline_mode = #tpu.pipeline_mode<synchronous>, transform_indices = @transform_1, window_bounds = array<i64: 32, 1024>}, {pipeline_mode = #tpu.pipeline_mode<synchronous>, transform_indices = @transform_2, window_bounds = array<i64: 1, 1024>}, {pipeline_mode = #tpu.pipeline_mode<synchronous>, transform_indices = @transform_3, window_bounds = array<i64: 1024, 128>}, {pipeline_mode = #tpu.pipeline_mode<synchronous>, transform_indices = @transform_4, window_bounds = array<i64: 1, 128>}, {transform_indices = @transform_5, window_bounds = array<i64: 128, 128>}]} {
    %c0 = arith.constant 0 : index
    %c0_0 = arith.constant 0 : index
    %0 = vector.load %arg1[%c0, %c0_0] : memref<128x32xf32, #tpu.memory_space<vmem>>, vector<128x32xf32>
    %1 = arith.truncf %0 : vector<128x32xf32> to vector<128x32xbf16>
    %c0_1 = arith.constant 0 : index
    %c0_2 = arith.constant 0 : index
    %2 = vector.load %arg2[%c0_1, %c0_2] : memref<32x1024xbf16, #tpu.memory_space<vmem>>, vector<32x1024xbf16>
    %cst = arith.constant dense<0.000000e+00> : vector<128x1024xf32>
    %3 = tpu.matmul %1, %2, %cst {dimension_numbers = #tpu.dot_dimension_numbers<[1], [0], [0], [1], [0, 0, 1, 1], [], []>} : vector<128x32xbf16>, vector<32x1024xbf16>, vector<128x1024xf32> -> vector<128x1024xf32>
    %c0_3 = arith.constant 0 : index
    %c0_4 = arith.constant 0 : index
    %4 = vector.load %arg3[%c0_3, %c0_4] : memref<1x1024xf32, #tpu.memory_space<vmem>>, vector<1x1024xf32>
    %5 = vector.broadcast %4 : vector<1x1024xf32> to vector<128x1024xf32>
    %6 = arith.addf %3, %5 : vector<128x1024xf32>
    %cst_5 = arith.constant 0.000000e+00 : f32
    %7 = vector.broadcast %cst_5 : f32 to vector<128x1024xf32>
    %8 = arith.maximumf %6, %7 : vector<128x1024xf32>
    %9 = arith.truncf %8 : vector<128x1024xf32> to vector<128x1024xbf16>
    %c0_6 = arith.constant 0 : index
    %c0_7 = arith.constant 0 : index
    %10 = vector.load %arg4[%c0_6, %c0_7] : memref<1024x128xbf16, #tpu.memory_space<vmem>>, vector<1024x128xbf16>
    %cst_8 = arith.constant dense<0.000000e+00> : vector<128x128xf32>
    %11 = tpu.matmul %9, %10, %cst_8 {dimension_numbers = #tpu.dot_dimension_numbers<[1], [0], [0], [1], [0, 0, 1, 1], [], []>} : vector<128x1024xbf16>, vector<1024x128xbf16>, vector<128x128xf32> -> vector<128x128xf32>
    %c0_9 = arith.constant 0 : index
    %c0_10 = arith.constant 0 : index
    %12 = vector.load %arg5[%c0_9, %c0_10] : memref<1x128xf32, #tpu.memory_space<vmem>>, vector<1x128xf32>
    %13 = vector.broadcast %12 : vector<1x128xf32> to vector<128x128xf32>
    %14 = arith.addf %11, %13 : vector<128x128xf32>
    %c0_11 = arith.constant 0 : index
    %c0_12 = arith.constant 0 : index
    %15 = vector.load %arg6[%c0_11, %c0_12] : memref<128x128xf32, #tpu.memory_space<vmem>>, vector<128x128xf32>
    tpu.vector_store %arg6[%c0_11, %c0_12], %14 {strides = array<i32>} : memref<128x128xf32, #tpu.memory_space<vmem>>, vector<128x128xf32>,
    return
  }
  func.func @transform_0(%arg0: i32) -> (i32, i32) {
    %c0_i32 = arith.constant 0 : i32
    %c0_i32_0 = arith.constant 0 : i32
    return %arg0, %c0_i32 : i32, i32
  }
  func.func @transform_1(%arg0: i32) -> (i32, i32) {
    %c0_i32 = arith.constant 0 : i32
    %c0_i32_0 = arith.constant 0 : i32
    %c0_i32_1 = arith.constant 0 : i32
    return %c0_i32, %c0_i32_0 : i32, i32
  }
  func.func @transform_2(%arg0: i32) -> (i32, i32) {
    %c0_i32 = arith.constant 0 : i32
    %c0_i32_0 = arith.constant 0 : i32
    %c0_i32_1 = arith.constant 0 : i32
    return %c0_i32, %c0_i32_0 : i32, i32
  }
  func.func @transform_3(%arg0: i32) -> (i32, i32) {
    %c0_i32 = arith.constant 0 : i32
    %c0_i32_0 = arith.constant 0 : i32
    %c0_i32_1 = arith.constant 0 : i32
    return %c0_i32, %c0_i32_0 : i32, i32
  }
  func.func @transform_4(%arg0: i32) -> (i32, i32) {
    %c0_i32 = arith.constant 0 : i32
    %c0_i32_0 = arith.constant 0 : i32
    %c0_i32_1 = arith.constant 0 : i32
    return %c0_i32, %c0_i32_0 : i32, i32
  }
  func.func @transform_5(%arg0: i32) -> (i32, i32) {
    %c0_i32 = arith.constant 0 : i32
    %c0_i32_0 = arith.constant 0 : i32
    return %arg0, %c0_i32 : i32, i32
  }
}

</mosaic_0001>

<llo_original>
// kernel: tpu_custom_call.1
$region0: #{tpu_custom_call.1}
  #allocation0 [shape = 'u32[]', space=smem, size = 0x4, offset = 0x4, fixed_abs, tag = 'smem constant byte address 0x4 - core index']
  #allocation1 [shape = 'u32[144,128]{1,0:T(1,128)}', space=vmem, size = 0x12000, scoped, tag = 'internal scratch']
  %s0 = inlined_call_operand.vmem [shape: f32[256,32], index: 0, kind: input, shape index: {}]
  %s1 = inlined_call_operand.vmem [shape: bf16[32,1024], index: 1, kind: input, shape index: {}]
  %s2 = inlined_call_operand.vmem [shape: f32[1,1024], index: 2, kind: input, shape index: {}]
  %s3 = inlined_call_operand.hbm [shape: bf16[1024,128], index: 3, kind: input, shape index: {}]
  %s4 = inlined_call_operand.vmem [shape: f32[1,128], index: 4, kind: input, shape index: {}]
  %s5 = inlined_call_operand.hbm [shape: f32[256,128], index: 5, kind: output, shape index: {}]
  %s6 = sld [smem:[#allocation0]]
  $region57: #{tpu_custom_call.1} parent=0
    _
  %s8 = ssub.s32 1, %s6
  %s9 = scalar_select 0, %s8, %s6
  $region1: #{tpu_custom_call.1} parent=0
    #allocation2 [shape = 'u8[262144]{0}', space=vmem, size = 0x40000, scoped, tag = 'input window, operand 3, single buffered']
    #allocation3 [shape = 's32[2]{0}', space=sflag, size = 0x8, scoped, tag = 'scoped memory for tpu_custom_call.1']
    #allocation4 [shape = 's32[2]{0}', space=sflag, size = 0x8, scoped, tag = 'scoped memory for tpu_custom_call.1']
    #allocation5 [shape = 'u8[131072]{0}', space=vmem, size = 0x20000, scoped, tag = 'output window, operand 0']
    %10 = vsyncpa [#allocation3], 0
    %11 = vsyncpa [#allocation4], 0
    %s12 = scalar_lea.sflag [#allocation4], 1
    %13 = vsyncpa %s12, 0
    loop: start=0, step=1, limit=4
    $region2: #{tpu_custom_call.1} parent=1 // loop_pre_header
      _
    $region3: #{tpu_custom_call.1} parent=1 // loop_header
      %s15 = sphi 0, %s19
      %p16 = scmp.ge.s32.totalorder %s15, 4
      %s25 = sphi 0, %s27
      %s28 = sphi 0, %s25
      %s29 = sphi 0, %s28
      %s45 = sphi 0, %s29
      %s49 = sphi 0, %s49
      %s51 = sphi 0, %s49
      %s52 = sphi 0, %s51
      %s66 = sphi 0, %s52
      %s70 = sphi 0, %s70
      %s72 = sphi 0, %s70
      %s73 = sphi 0, %s72
      %s87 = sphi 0, %s73
      %s91 = sphi 0, %s91
      %s93 = sphi 0, %s91
      %s94 = sphi 0, %s93
      %s108 = sphi 0, %s94
      %s112 = sphi 0, %s112
      %s114 = sphi 0, %s112
      %s115 = sphi 0, %s114
      %s129 = sphi 0, %s115
      %s135 = sphi 0, %s137
      %s138 = sphi 0, %s135
      %s139 = sphi 0, %s138
      %s155 = sphi 0, %s139
    $region4: #{tpu_custom_call.1} parent=1 // loop_header_branch
      %18 = sbr.rel (%p16) target = $region8
    $region5: #{tpu_custom_call.1} parent=1 // loop_body
      %s20 = ssub.s32 %s15, 1
      %s21 = ssub.s32 %s15, 2
      %s22 = sadd.s32 %s15, 1
      %s23 = ssub.s32 %s15, %s22
      %p24 = scmp.eq.s32.totalorder %s23, 0
      %s26 = sadd.s32 %s25, 1
      %s27 = scalar_select %p24, %s25, %s26
      %p30 = pneg %p24
      %p31 = scmp.eq.s32.totalorder %s15, 1
      %p32 = por %p30, %p31
      %p33 = scmp.ne.s32.totalorder %s25, %s28
      %p34 = scmp.eq.s32.totalorder %s15, 0
      %p35 = por %p33, %p34
      %p36 = scmp.ne.s32.totalorder %s25, %s28
      %p37 = scmp.eq.s32.totalorder %s20, 1
      %p38 = por %p36, %p37
      %p39 = scmp.ne.s32.totalorder %s28, %s29
      %p40 = scmp.eq.s32.totalorder %s20, 0
      %p41 = por %p39, %p40
      %p42 = scmp.ne.s32.totalorder %s28, %s29
      %p43 = scmp.eq.s32.totalorder %s21, 1
      %p44 = por %p42, %p43
      %p46 = scmp.ne.s32.totalorder %s29, %s45
      %p47 = scmp.eq.s32.totalorder %s21, 0
      %p48 = por %p46, %p47
      %s50 = sadd.s32 %s49, 1
      %p53 = scmp.eq.s32.totalorder %s15, 1
      %p54 = scmp.ne.s32.totalorder %s49, %s51
      %p55 = scmp.eq.s32.totalorder %s15, 0
      %p56 = por %p54, %p55
      %p57 = scmp.ne.s32.totalorder %s49, %s51
      %p58 = scmp.eq.s32.totalorder %s20, 1
      %p59 = por %p57, %p58
      %p60 = scmp.ne.s32.totalorder %s51, %s52
      %p61 = scmp.eq.s32.totalorder %s20, 0
      %p62 = por %p60, %p61
      %p63 = scmp.ne.s32.totalorder %s51, %s52
      %p64 = scmp.eq.s32.totalorder %s21, 1
      %p65 = por %p63, %p64
      %p67 = scmp.ne.s32.totalorder %s52, %s66
      %p68 = scmp.eq.s32.totalorder %s21, 0
      %p69 = por %p67, %p68
      %s71 = sadd.s32 %s70, 1
      %p74 = scmp.eq.s32.totalorder %s15, 1
      %p75 = scmp.ne.s32.totalorder %s70, %s72
      %p76 = scmp.eq.s32.totalorder %s15, 0
      %p77 = por %p75, %p76
      %p78 = scmp.ne.s32.totalorder %s70, %s72
      %p79 = scmp.eq.s32.totalorder %s20, 1
      %p80 = por %p78, %p79
      %p81 = scmp.ne.s32.totalorder %s72, %s73
      %p82 = scmp.eq.s32.totalorder %s20, 0
      %p83 = por %p81, %p82
      %p84 = scmp.ne.s32.totalorder %s72, %s73
      %p85 = scmp.eq.s32.totalorder %s21, 1
      %p86 = por %p84, %p85
      %p88 = scmp.ne.s32.totalorder %s73, %s87
      %p89 = scmp.eq.s32.totalorder %s21, 0
      %p90 = por %p88, %p89
      %s92 = sadd.s32 %s91, 1
      %p95 = scmp.eq.s32.totalorder %s15, 1
      %p96 = scmp.ne.s32.totalorder %s91, %s93
      %p97 = scmp.eq.s32.totalorder %s15, 0
      %p98 = por %p96, %p97
      %p99 = scmp.ne.s32.totalorder %s91, %s93
      %p100 = scmp.eq.s32.totalorder %s20, 1
      %p101 = por %p99, %p100
      %p102 = scmp.ne.s32.totalorder %s93, %s94
      %p103 = scmp.eq.s32.totalorder %s20, 0
      %p104 = por %p102, %p103
      %p105 = scmp.ne.s32.totalorder %s93, %s94
      %p106 = scmp.eq.s32.totalorder %s21, 1
      %p107 = por %p105, %p106
      %p109 = scmp.ne.s32.totalorder %s94, %s108
      %p110 = scmp.eq.s32.totalorder %s21, 0
      %p111 = por %p109, %p110
      %s113 = sadd.s32 %s112, 1
      %p116 = scmp.eq.s32.totalorder %s15, 1
      %p117 = scmp.ne.s32.totalorder %s112, %s114
      %p118 = scmp.eq.s32.totalorder %s15, 0
      %p119 = por %p117, %p118
      %p120 = scmp.ne.s32.totalorder %s112, %s114
      %p121 = scmp.eq.s32.totalorder %s20, 1
      %p122 = por %p120, %p121
      %p123 = scmp.ne.s32.totalorder %s114, %s115
      %p124 = scmp.eq.s32.totalorder %s20, 0
      %p125 = por %p123, %p124
      %p126 = scmp.ne.s32.totalorder %s114, %s115
      %p127 = scmp.eq.s32.totalorder %s21, 1
      %p128 = por %p126, %p127
      %p130 = scmp.ne.s32.totalorder %s115, %s129
      %p131 = scmp.eq.s32.totalorder %s21, 0
      %p132 = por %p130, %p131
      %s133 = ssub.s32 %s15, %s22
      %p134 = scmp.eq.s32.totalorder %s133, 0
      %s136 = sadd.s32 %s135, 1
      %s137 = scalar_select %p134, %s135, %s136
      %p140 = pneg %p134
      %p141 = scmp.eq.s32.totalorder %s15, 1
      %p142 = por %p140, %p141
      %p143 = scmp.ne.s32.totalorder %s135, %s138
      %p144 = scmp.eq.s32.totalorder %s15, 0
      %p145 = por %p143, %p144
      %p146 = scmp.ne.s32.totalorder %s135, %s138
      %p147 = scmp.eq.s32.totalorder %s20, 1
      %p148 = por %p146, %p147
      %p149 = scmp.ne.s32.totalorder %s138, %s139
      %p150 = scmp.eq.s32.totalorder %s20, 0
      %p151 = por %p149, %p150
      %p152 = scmp.ne.s32.totalorder %s138, %s139
      %p153 = scmp.eq.s32.totalorder %s21, 1
      %p154 = por %p152, %p153
      %p156 = scmp.ne.s32.totalorder %s139, %s155
      %p157 = scmp.eq.s32.totalorder %s21, 0
      %p158 = por %p156, %p157
      %p159 = scmp.le.s32.totalorder 1, %s15
      %p160 = scmp.lt.s32.totalorder %s15, 3
      %p161 = pnand %p159, %p160
      %p162 = pneg %p161
      // Predicated region
      $region9: #{tpu_custom_call.1} parent=5 // pred_check
        _
      $region10: #{tpu_custom_call.1} parent=5 // pred_check_branch
        %164 = sbr.rel (%p161) target = $region12
      $region11: #{tpu_custom_call.1} parent=5 // pred_region
        %s165 = ssub.s32 %s15, 1
        // Predicated region
        $region13: #{tpu_custom_call.1} parent=11 // pred_check
          %p166 = pneg %p62
        $region14: #{tpu_custom_call.1} parent=11 // pred_check_branch
          %168 = sbr.rel (%p166) target = $region16
        $region15: #{tpu_custom_call.1} parent=11 // pred_region
          _
        $region16: #{tpu_custom_call.1} parent=11 // pred_fallthru
          _
        // Predicated region
        $region17: #{tpu_custom_call.1} parent=11 // pred_check
          %p169 = pneg %p83
        $region18: #{tpu_custom_call.1} parent=11 // pred_check_branch
          %171 = sbr.rel (%p169) target = $region20
        $region19: #{tpu_custom_call.1} parent=11 // pred_region
          _
        $region20: #{tpu_custom_call.1} parent=11 // pred_fallthru
          _
        // Predicated region
        $region21: #{tpu_custom_call.1} parent=11 // pred_check
          %p172 = pneg %p104
        $region22: #{tpu_custom_call.1} parent=11 // pred_check_branch
          %174 = sbr.rel (%p172) target = $region24
        $region23: #{tpu_custom_call.1} parent=11 // pred_region
          %s176 = ssub.s32 8192, 8192
          %177 = vsyncadd [#allocation3], %s176
          %s178 = sshll.u32 [#allocation2], 4
          %s179 = int_to_ptr.vmem [resolvable:$true] %s178
          %184 = dma.hbm_to_vmem [thread:$0]  %s3, 8192, %s179, [#allocation3], 64, 64, 4
        $region24: #{tpu_custom_call.1} parent=11 // pred_fallthru
          _
        // Predicated region
        $region25: #{tpu_custom_call.1} parent=11 // pred_check
          %p185 = pneg %p125
        $region26: #{tpu_custom_call.1} parent=11 // pred_check_branch
          %187 = sbr.rel (%p185) target = $region28
        $region27: #{tpu_custom_call.1} parent=11 // pred_region
          _
        $region28: #{tpu_custom_call.1} parent=11 // pred_fallthru
          _
      $region12: #{tpu_custom_call.1} parent=5 // pred_fallthru
        _
      %p188 = scmp.lt.s32.totalorder %s15, 2
      // Predicated region
      $region29: #{tpu_custom_call.1} parent=5 // pred_check
        %p189 = pneg %p188
      $region30: #{tpu_custom_call.1} parent=5 // pred_check_branch
        %191 = sbr.rel (%p189) target = $region32
      $region31: #{tpu_custom_call.1} parent=5 // pred_region
        // Predicated region
        $region33: #{tpu_custom_call.1} parent=31 // pred_check
          %p192 = pneg %p35
        $region34: #{tpu_custom_call.1} parent=31 // pred_check_branch
          %194 = sbr.rel (%p192) target = $region36
        $region35: #{tpu_custom_call.1} parent=31 // pred_region
          %s195 = smul.u32 16, %s15
          %p196 = scmp.lt.s32.totalorder %s195, 31
          %s197 = scalar_select %p196, %s195, 31
          %s198 = smul.addr %s197, 8
          %s199 = scalar_lea.vmem %s0, %s198
          %s200 = smul.u32 16, %s15
        $region36: #{tpu_custom_call.1} parent=31 // pred_fallthru
          _
      $region32: #{tpu_custom_call.1} parent=5 // pred_fallthru
        _
      %p201 = scmp.le.s32.totalorder 1, %s15
      %p202 = scmp.lt.s32.totalorder %s15, 3
      %p203 = pnand %p201, %p202
      %p204 = pneg %p203
      // Predicated region
      $region37: #{tpu_custom_call.1} parent=5 // pred_check
        _
      $region38: #{tpu_custom_call.1} parent=5 // pred_check_branch
        %206 = sbr.rel (%p203) target = $region40
      $region39: #{tpu_custom_call.1} parent=5 // pred_region
        %s207 = ssub.s32 %s15, 1
        // Predicated region
        $region41: #{tpu_custom_call.1} parent=39 // pred_check
          %p208 = pneg %p104
        $region42: #{tpu_custom_call.1} parent=39 // pred_check_branch
          %210 = sbr.rel (%p208) target = $region44
        $region43: #{tpu_custom_call.1} parent=39 // pred_region
          %211 = dma.done [#allocation3], 8192
        $region44: #{tpu_custom_call.1} parent=39 // pred_fallthru
          _
        %s212 = smul.u32 16, %s20
        %p213 = scmp.lt.s32.totalorder %s212, 31
        %s214 = scalar_select %p213, %s212, 31
        %s215 = smul.addr %s214, 8
        %s216 = scalar_lea.vmem %s0, %s215
        %p217 = pneg %p41
        %p218 = pneg %p38
        %p219 = pneg %p62
        %p220 = pneg %p59
        %p221 = pneg %p83
        %p222 = pneg %p80
        %p223 = pneg %p104
        %p224 = pneg %p101
        %p225 = pneg %p125
        %p226 = pneg %p122
        %p227 = pneg %p151
        %p228 = pneg %p148
        %s229 = sand.u32 %s138, 1
        %s230 = scalar_lea.sflag [#allocation4], %s229
        %s231 = sand.u32 %s138, 1
        %s232 = smul.addr %s231, 128
        %s233 = scalar_lea.vmem [#allocation5], %s232
        %s234 = smul.u32 16, %s20
        %p235 = scmp.lt.s32.totalorder %s234, 31
        %s236 = scalar_select %p235, %s234, 31
        %s237 = smul.addr %s236, 8
        %s238 = scalar_lea.vmem %s0, %s237
        %s239 = smul.u32 16, %s20
        %s240 = smul.u32 16, %s20
        %v242 = vld [vmem:[%s238] sm:$0xff]
        %v243 = vld [vmem:[%s238 + $0x8] sm:$0xff]
        %v244 = vld [vmem:[%s238 + $0x10] sm:$0xff]
        %v245 = vld [vmem:[%s238 + $0x18] sm:$0xff]
        %v246 = vld [vmem:[%s238 + $0x20] sm:$0xff]
        %v247 = vld [vmem:[%s238 + $0x28] sm:$0xff]
        %v248 = vld [vmem:[%s238 + $0x30] sm:$0xff]
        %v249 = vld [vmem:[%s238 + $0x38] sm:$0xff]
        %v250 = vld [vmem:[%s238 + $0x40] sm:$0xff]
        %v251 = vld [vmem:[%s238 + $0x48] sm:$0xff]
        %v252 = vld [vmem:[%s238 + $0x50] sm:$0xff]
        %v253 = vld [vmem:[%s238 + $0x58] sm:$0xff]
        %v254 = vld [vmem:[%s238 + $0x60] sm:$0xff]
        %v255 = vld [vmem:[%s238 + $0x68] sm:$0xff]
        %v256 = vld [vmem:[%s238 + $0x70] sm:$0xff]
        %v257 = vld [vmem:[%s238 + $0x78] sm:$0xff]
        %v258 = vpack.c.bf16 %v243, %v242
        %v259 = vpack.c.bf16 %v245, %v244
        %v260 = vpack.c.bf16 %v247, %v246
        %v261 = vpack.c.bf16 %v249, %v248
        %v262 = vpack.c.bf16 %v251, %v250
        %v263 = vpack.c.bf16 %v253, %v252
        %v264 = vpack.c.bf16 %v255, %v254
        %v265 = vpack.c.bf16 %v257, %v256
        %v266 = vld [vmem:[%s1] sm:$0xff]
        %v267 = vld [vmem:[%s1 + $0x8] sm:$0xff]
        %v268 = vld [vmem:[%s1 + $0x10] sm:$0xff]
        %v269 = vld [vmem:[%s1 + $0x18] sm:$0xff]
        %v270 = vld [vmem:[%s1 + $0x20] sm:$0xff]
        %v271 = vld [vmem:[%s1 + $0x28] sm:$0xff]
        %v272 = vld [vmem:[%s1 + $0x30] sm:$0xff]
        %v273 = vld [vmem:[%s1 + $0x38] sm:$0xff]
        %v274 = vld [vmem:[%s1 + $0x40] sm:$0xff]
        %v275 = vld [vmem:[%s1 + $0x48] sm:$0xff]
        %v276 = vld [vmem:[%s1 + $0x50] sm:$0xff]
        %v277 = vld [vmem:[%s1 + $0x58] sm:$0xff]
        %v278 = vld [vmem:[%s1 + $0x60] sm:$0xff]
        %v279 = vld [vmem:[%s1 + $0x68] sm:$0xff]
        %v280 = vld [vmem:[%s1 + $0x70] sm:$0xff]
        %v281 = vld [vmem:[%s1 + $0x78] sm:$0xff]
        %v282 = vld [vmem:[%s2] sm:$0xff]
        %v284 = vlaneseq
        %v285 = vshrl.u32 %v284, 7
        %v286 = vsub.s32 0, %v285
        %v287 = vrot.slane %v282, %v286
        %v288 = vlaneseq
        %v289 = vshrl.u32 %v288, 7
        %v290 = vsub.s32 1, %v289
        %v291 = vrot.slane %v282, %v290
        %v292 = vlaneseq
        %v293 = vshrl.u32 %v292, 7
        %v294 = vsub.s32 2, %v293
        %v295 = vrot.slane %v282, %v294
        %v296 = vlaneseq
        %v297 = vshrl.u32 %v296, 7
        %v298 = vsub.s32 3, %v297
        %v299 = vrot.slane %v282, %v298
        %v300 = vlaneseq
        %v301 = vshrl.u32 %v300, 7
        %v302 = vsub.s32 4, %v301
        %v303 = vrot.slane %v282, %v302
        %v304 = vlaneseq
        %v305 = vshrl.u32 %v304, 7
        %v306 = vsub.s32 5, %v305
        %v307 = vrot.slane %v282, %v306
        %v308 = vlaneseq
        %v309 = vshrl.u32 %v308, 7
        %v310 = vsub.s32 6, %v309
        %v311 = vrot.slane %v282, %v310
        %v312 = vlaneseq
        %v313 = vshrl.u32 %v312, 7
        %v314 = vsub.s32 7, %v313
        %v315 = vrot.slane %v282, %v314
        %v340 = vunpack.c.l.b16 %v266
        %v341 = vunpack.c.h.b16 %v266
        %v342 = vunpack.c.l.b16 %v267
        %v343 = vunpack.c.h.b16 %v267
        %v344 = vunpack.c.l.b16 %v268
        %v345 = vunpack.c.h.b16 %v268
        %v346 = vunpack.c.l.b16 %v269
        %v347 = vunpack.c.h.b16 %v269
        %v348 = vunpack.c.l.b16 %v270
        %v349 = vunpack.c.h.b16 %v270
        %v350 = vunpack.c.l.b16 %v271
        %v351 = vunpack.c.h.b16 %v271
        %v352 = vunpack.c.l.b16 %v272
        %v353 = vunpack.c.h.b16 %v272
        %v354 = vunpack.c.l.b16 %v273
        %v355 = vunpack.c.h.b16 %v273
        %v356 = vunpack.c.l.b16 %v274
        %v357 = vunpack.c.h.b16 %v274
        %v358 = vunpack.c.l.b16 %v275
        %v359 = vunpack.c.h.b16 %v275
        %v360 = vunpack.c.l.b16 %v276
        %v361 = vunpack.c.h.b16 %v276
        %v362 = vunpack.c.l.b16 %v277
        %v363 = vunpack.c.h.b16 %v277
        %v364 = vunpack.c.l.b16 %v278
        %v365 = vunpack.c.h.b16 %v278
        %v366 = vunpack.c.l.b16 %v279
        %v367 = vunpack.c.h.b16 %v279
        %v368 = vunpack.c.l.b16 %v280
        %v369 = vunpack.c.h.b16 %v280
        %v370 = vunpack.c.l.b16 %v281
        %v371 = vunpack.c.h.b16 %v281
        %v372 = vpack.c.b16 %v348, %v340
        %v373 = vpack.c.b16 %v349, %v341
        %v374 = vpack.c.b16 %v350, %v342
        %v375 = vpack.c.b16 %v351, %v343
        %v376 = vpack.c.b16 %v352, %v344
        %v377 = vpack.c.b16 %v353, %v345
        %v378 = vpack.c.b16 %v354, %v346
        %v379 = vpack.c.b16 %v355, %v347
        %v380 = vpack.c.b16 %v364, %v356
        %v381 = vpack.c.b16 %v365, %v357
        %v382 = vpack.c.b16 %v366, %v358
        %v383 = vpack.c.b16 %v367, %v359
        %v384 = vpack.c.b16 %v368, %v360
        %v385 = vpack.c.b16 %v369, %v361
        %v386 = vpack.c.b16 %v370, %v362
        %v387 = vpack.c.b16 %v371, %v363
        %vm404 = vcmask 261120
        %v406 = vsel %vm404, %v258, 0
        %v409 = vsel %vm404, %v259, 0
        %v412 = vsel %vm404, %v260, 0
        %v415 = vsel %vm404, %v261, 0
        %v418 = vsel %vm404, %v262, 0
        %v421 = vsel %vm404, %v263, 0
        %v424 = vsel %vm404, %v264, 0
        %v427 = vsel %vm404, %v265, 0
        %429 = vmatprep.subr.bf16.mxu0 0
        %430 = vmatpush1.bf16.msra.mxu0 0
        %431 = vmatprep.subr.bf16.mxu0 0
        %432 = vmatpush1.bf16.msra.mxu0 0
        %433 = vmatprep.subr.bf16.mxu0 0
        %434 = vmatpush1.bf16.msra.mxu0 0
        %435 = vmatprep.subr.bf16.mxu0 0
        %436 = vmatpush1.bf16.msra.mxu0 0
        %437 = vmatprep.subr.bf16.mxu0 0
        %438 = vmatpush1.bf16.msra.mxu0 0
        %439 = vmatprep.subr.bf16.mxu0 0
        %440 = vmatpush1.bf16.msra.mxu0 0
        %441 = vmatprep.subr.bf16.mxu0 %v381
        %442 = vmatpush1.bf16.msra.mxu0 %v380
        %443 = vmatprep.subr.bf16.mxu0 %v373
        %444 = vmatpush1.bf16.msra.mxu0 %v372
        %445 = vmatprep.subr.bf16.mxu0 0
        %446 = vmatpush2.bf16.msra.mxu0 0
        %447 = vmatprep.subr.bf16.mxu0 0
        %448 = vmatpush2.bf16.msra.mxu0 0
        %449 = vmatprep.subr.bf16.mxu0 0
        %450 = vmatpush2.bf16.msra.mxu0 0
        %451 = vmatprep.subr.bf16.mxu0 0
        %452 = vmatpush2.bf16.msra.mxu0 0
        %453 = vmatprep.subr.bf16.mxu0 0
        %454 = vmatpush2.bf16.msra.mxu0 0
        %455 = vmatprep.subr.bf16.mxu0 0
        %456 = vmatpush2.bf16.msra.mxu0 0
        %457 = vmatprep.subr.bf16.mxu0 0
        %458 = vmatpush2.bf16.msra.mxu0 0
        %459 = vmatprep.subr.bf16.mxu0 0
        %460 = vmatpush2.bf16.msra.mxu0 0
        %461 = vmatprep.mubr.bf16.mxu0 0
        %462 = vmatmul.mubr.bf16.gmra.mxu0 %v406
        %v463 = vpop.f32.mrf.mxu0
        %v464 = vadd.f32 %v287, %v463
        %v465 = vpop.f32.mrf.mxu0
        %v466 = vadd.f32 %v291, %v465
        %v467 = vpop.f32.mrf.mxu0
        %v468 = vadd.f32 %v287, %v467
        %v469 = vpop.f32.mrf.mxu0
        %v470 = vadd.f32 %v291, %v469
        %471 = vmatprep.mubr.bf16.mxu0 0
        %472 = vmatmul.mubr.bf16.gmra.mxu0 %v409
        %v473 = vpop.f32.mrf.mxu0
        %v474 = vadd.f32 %v287, %v473
        %v475 = vpop.f32.mrf.mxu0
        %v476 = vadd.f32 %v291, %v475
        %v477 = vpop.f32.mrf.mxu0
        %v478 = vadd.f32 %v287, %v477
        %v479 = vpop.f32.mrf.mxu0
        %v480 = vadd.f32 %v291, %v479
        %481 = vmatprep.mubr.bf16.mxu0 0
        %482 = vmatmul.mubr.bf16.gmra.mxu0 %v412
        %v483 = vpop.f32.mrf.mxu0
        %v484 = vadd.f32 %v287, %v483
        %v485 = vpop.f32.mrf.mxu0
        %v486 = vadd.f32 %v291, %v485
        %v487 = vpop.f32.mrf.mxu0
        %v488 = vadd.f32 %v287, %v487
        %v489 = vpop.f32.mrf.mxu0
        %v490 = vadd.f32 %v291, %v489
        %491 = vmatprep.mubr.bf16.mxu0 0
        %492 = vmatmul.mubr.bf16.gmra.mxu0 %v415
        %v493 = vpop.f32.mrf.mxu0
        %v494 = vadd.f32 %v287, %v493
        %v495 = vpop.f32.mrf.mxu0
        %v496 = vadd.f32 %v291, %v495
        %v497 = vpop.f32.mrf.mxu0
        %v498 = vadd.f32 %v287, %v497
        %v499 = vpop.f32.mrf.mxu0
        %v500 = vadd.f32 %v291, %v499
        %501 = vmatprep.mubr.bf16.mxu0 0
        %502 = vmatmul.mubr.bf16.gmra.mxu0 %v418
        %v503 = vpop.f32.mrf.mxu0
        %v504 = vadd.f32 %v287, %v503
        %v505 = vpop.f32.mrf.mxu0
        %v506 = vadd.f32 %v291, %v505
        %v507 = vpop.f32.mrf.mxu0
        %v508 = vadd.f32 %v287, %v507
        %v509 = vpop.f32.mrf.mxu0
        %v510 = vadd.f32 %v291, %v509
        %511 = vmatprep.mubr.bf16.mxu0 0
        %512 = vmatmul.mubr.bf16.gmra.mxu0 %v421
        %v513 = vpop.f32.mrf.mxu0
        %v514 = vadd.f32 %v287, %v513
        %v515 = vpop.f32.mrf.mxu0
        %v516 = vadd.f32 %v291, %v515
        %v517 = vpop.f32.mrf.mxu0
        %v518 = vadd.f32 %v287, %v517
        %v519 = vpop.f32.mrf.mxu0
        %v520 = vadd.f32 %v291, %v519
        %521 = vmatprep.mubr.bf16.mxu0 0
        %522 = vmatmul.mubr.bf16.gmra.mxu0 %v424
        %v523 = vpop.f32.mrf.mxu0
        %v524 = vadd.f32 %v287, %v523
        %v525 = vpop.f32.mrf.mxu0
        %v526 = vadd.f32 %v291, %v525
        %v527 = vpop.f32.mrf.mxu0
        %v528 = vadd.f32 %v287, %v527
        %v529 = vpop.f32.mrf.mxu0
        %v530 = vadd.f32 %v291, %v529
        %531 = vmatprep.mubr.bf16.mxu0 0
        %532 = vmatmul.mubr.bf16.gmra.mxu0 %v427
        %v533 = vpop.f32.mrf.mxu0
        %v534 = vadd.f32 %v287, %v533
        %v535 = vpop.f32.mrf.mxu0
        %v536 = vadd.f32 %v291, %v535
        %v537 = vpop.f32.mrf.mxu0
        %v538 = vadd.f32 %v287, %v537
        %v539 = vpop.f32.mrf.mxu0
        %v540 = vadd.f32 %v291, %v539
        %541 = vdwg.mxu0
        %542 = vmatprep.subr.bf16.mxu0 0
        %543 = vmatpush1.bf16.msra.mxu0 0
        %544 = vmatprep.subr.bf16.mxu0 0
        %545 = vmatpush1.bf16.msra.mxu0 0
        %546 = vmatprep.subr.bf16.mxu0 0
        %547 = vmatpush1.bf16.msra.mxu0 0
        %548 = vmatprep.subr.bf16.mxu0 0
        %549 = vmatpush1.bf16.msra.mxu0 0
        %550 = vmatprep.subr.bf16.mxu0 0
        %551 = vmatpush1.bf16.msra.mxu0 0
        %552 = vmatprep.subr.bf16.mxu0 0
        %553 = vmatpush1.bf16.msra.mxu0 0
        %554 = vmatprep.subr.bf16.mxu0 %v383
        %555 = vmatpush1.bf16.msra.mxu0 %v382
        %556 = vmatprep.subr.bf16.mxu0 %v375
        %557 = vmatpush1.bf16.msra.mxu0 %v374
        %558 = vmatprep.subr.bf16.mxu0 0
        %559 = vmatpush2.bf16.msra.mxu0 0
        %560 = vmatprep.subr.bf16.mxu0 0
        %561 = vmatpush2.bf16.msra.mxu0 0
        %562 = vmatprep.subr.bf16.mxu0 0
        %563 = vmatpush2.bf16.msra.mxu0 0
        %564 = vmatprep.subr.bf16.mxu0 0
        %565 = vmatpush2.bf16.msra.mxu0 0
        %566 = vmatprep.subr.bf16.mxu0 0
        %567 = vmatpush2.bf16.msra.mxu0 0
        %568 = vmatprep.subr.bf16.mxu0 0
        %569 = vmatpush2.bf16.msra.mxu0 0
        %570 = vmatprep.subr.bf16.mxu0 0
        %571 = vmatpush2.bf16.msra.mxu0 0
        %572 = vmatprep.subr.bf16.mxu0 0
        %573 = vmatpush2.bf16.msra.mxu0 0
        %574 = vmatprep.mubr.bf16.mxu0 0
        %575 = vmatmul.mubr.bf16.gmra.mxu0 %v406
        %v576 = vpop.f32.mrf.mxu0
        %v577 = vadd.f32 %v295, %v576
        %v578 = vpop.f32.mrf.mxu0
        %v579 = vadd.f32 %v299, %v578
        %v580 = vpop.f32.mrf.mxu0
        %v581 = vadd.f32 %v295, %v580
        %v582 = vpop.f32.mrf.mxu0
        %v583 = vadd.f32 %v299, %v582
        %584 = vmatprep.mubr.bf16.mxu0 0
        %585 = vmatmul.mubr.bf16.gmra.mxu0 %v409
        %v586 = vpop.f32.mrf.mxu0
        %v587 = vadd.f32 %v295, %v586
        %v588 = vpop.f32.mrf.mxu0
        %v589 = vadd.f32 %v299, %v588
        %v590 = vpop.f32.mrf.mxu0
        %v591 = vadd.f32 %v295, %v590
        %v592 = vpop.f32.mrf.mxu0
        %v593 = vadd.f32 %v299, %v592
        %594 = vmatprep.mubr.bf16.mxu0 0
        %595 = vmatmul.mubr.bf16.gmra.mxu0 %v412
        %v596 = vpop.f32.mrf.mxu0
        %v597 = vadd.f32 %v295, %v596
        %v598 = vpop.f32.mrf.mxu0
        %v599 = vadd.f32 %v299, %v598
        %v600 = vpop.f32.mrf.mxu0
        %v601 = vadd.f32 %v295, %v600
        %v602 = vpop.f32.mrf.mxu0
        %v603 = vadd.f32 %v299, %v602
        %604 = vmatprep.mubr.bf16.mxu0 0
        %605 = vmatmul.mubr.bf16.gmra.mxu0 %v415
        %v606 = vpop.f32.mrf.mxu0
        %v607 = vadd.f32 %v295, %v606
        %v608 = vpop.f32.mrf.mxu0
        %v609 = vadd.f32 %v299, %v608
        %v610 = vpop.f32.mrf.mxu0
        %v611 = vadd.f32 %v295, %v610
        %v612 = vpop.f32.mrf.mxu0
        %v613 = vadd.f32 %v299, %v612
        %614 = vmatprep.mubr.bf16.mxu0 0
        %615 = vmatmul.mubr.bf16.gmra.mxu0 %v418
        %v616 = vpop.f32.mrf.mxu0
        %v617 = vadd.f32 %v295, %v616
        %v618 = vpop.f32.mrf.mxu0
        %v619 = vadd.f32 %v299, %v618
        %v620 = vpop.f32.mrf.mxu0
        %v621 = vadd.f32 %v295, %v620
        %v622 = vpop.f32.mrf.mxu0
        %v623 = vadd.f32 %v299, %v622
        %624 = vmatprep.mubr.bf16.mxu0 0
        %625 = vmatmul.mubr.bf16.gmra.mxu0 %v421
        %v626 = vpop.f32.mrf.mxu0
        %v627 = vadd.f32 %v295, %v626
        %v628 = vpop.f32.mrf.mxu0
        %v629 = vadd.f32 %v299, %v628
        %v630 = vpop.f32.mrf.mxu0
        %v631 = vadd.f32 %v295, %v630
        %v632 = vpop.f32.mrf.mxu0
        %v633 = vadd.f32 %v299, %v632
        %634 = vmatprep.mubr.bf16.mxu0 0
        %635 = vmatmul.mubr.bf16.gmra.mxu0 %v424
        %v636 = vpop.f32.mrf.mxu0
        %v637 = vadd.f32 %v295, %v636
        %v638 = vpop.f32.mrf.mxu0
        %v639 = vadd.f32 %v299, %v638
        %v640 = vpop.f32.mrf.mxu0
        %v641 = vadd.f32 %v295, %v640
        %v642 = vpop.f32.mrf.mxu0
        %v643 = vadd.f32 %v299, %v642
        %644 = vmatprep.mubr.bf16.mxu0 0
        %645 = vmatmul.mubr.bf16.gmra.mxu0 %v427
        %v646 = vpop.f32.mrf.mxu0
        %v647 = vadd.f32 %v295, %v646
        %v648 = vpop.f32.mrf.mxu0
        %v649 = vadd.f32 %v299, %v648
        %v650 = vpop.f32.mrf.mxu0
        %v651 = vadd.f32 %v295, %v650
        %v652 = vpop.f32.mrf.mxu0
        %v653 = vadd.f32 %v299, %v652
        %654 = vdwg.mxu0
        %655 = vmatprep.subr.bf16.mxu0 0
        %656 = vmatpush1.bf16.msra.mxu0 0
        %657 = vmatprep.subr.bf16.mxu0 0
        %658 = vmatpush1.bf16.msra.mxu0 0
        %659 = vmatprep.subr.bf16.mxu0 0
        %660 = vmatpush1.bf16.msra.mxu0 0
        %661 = vmatprep.subr.bf16.mxu0 0
        %662 = vmatpush1.bf16.msra.mxu0 0
        %663 = vmatprep.subr.bf16.mxu0 0
        %664 = vmatpush1.bf16.msra.mxu0 0
        %665 = vmatprep.subr.bf16.mxu0 0
        %666 = vmatpush1.bf16.msra.mxu0 0
        %667 = vmatprep.subr.bf16.mxu0 %v385
        %668 = vmatpush1.bf16.msra.mxu0 %v384
        %669 = vmatprep.subr.bf16.mxu0 %v377
        %670 = vmatpush1.bf16.msra.mxu0 %v376
        %671 = vmatprep.subr.bf16.mxu0 0
        %672 = vmatpush2.bf16.msra.mxu0 0
        %673 = vmatprep.subr.bf16.mxu0 0
        %674 = vmatpush2.bf16.msra.mxu0 0
        %675 = vmatprep.subr.bf16.mxu0 0
        %676 = vmatpush2.bf16.msra.mxu0 0
        %677 = vmatprep.subr.bf16.mxu0 0
        %678 = vmatpush2.bf16.msra.mxu0 0
        %679 = vmatprep.subr.bf16.mxu0 0
        %680 = vmatpush2.bf16.msra.mxu0 0
        %681 = vmatprep.subr.bf16.mxu0 0
        %682 = vmatpush2.bf16.msra.mxu0 0
        %683 = vmatprep.subr.bf16.mxu0 0
        %684 = vmatpush2.bf16.msra.mxu0 0
        %685 = vmatprep.subr.bf16.mxu0 0
        %686 = vmatpush2.bf16.msra.mxu0 0
        %687 = vmatprep.mubr.bf16.mxu0 0
        %688 = vmatmul.mubr.bf16.gmra.mxu0 %v406
        %v689 = vpop.f32.mrf.mxu0
        %v690 = vadd.f32 %v303, %v689
        %v691 = vpop.f32.mrf.mxu0
        %v692 = vadd.f32 %v307, %v691
        %v693 = vpop.f32.mrf.mxu0
        %v694 = vadd.f32 %v303, %v693
        %v695 = vpop.f32.mrf.mxu0
        %v696 = vadd.f32 %v307, %v695
        %697 = vmatprep.mubr.bf16.mxu0 0
        %698 = vmatmul.mubr.bf16.gmra.mxu0 %v409
        %v699 = vpop.f32.mrf.mxu0
        %v700 = vadd.f32 %v303, %v699
        %v701 = vpop.f32.mrf.mxu0
        %v702 = vadd.f32 %v307, %v701
        %v703 = vpop.f32.mrf.mxu0
        %v704 = vadd.f32 %v303, %v703
        %v705 = vpop.f32.mrf.mxu0
        %v706 = vadd.f32 %v307, %v705
        %707 = vmatprep.mubr.bf16.mxu0 0
        %708 = vmatmul.mubr.bf16.gmra.mxu0 %v412
        %v709 = vpop.f32.mrf.mxu0
        %v710 = vadd.f32 %v303, %v709
        %v711 = vpop.f32.mrf.mxu0
        %v712 = vadd.f32 %v307, %v711
        %v713 = vpop.f32.mrf.mxu0
        %v714 = vadd.f32 %v303, %v713
        %v715 = vpop.f32.mrf.mxu0
        %v716 = vadd.f32 %v307, %v715
        %717 = vmatprep.mubr.bf16.mxu0 0
        %718 = vmatmul.mubr.bf16.gmra.mxu0 %v415
        %v719 = vpop.f32.mrf.mxu0
        %v720 = vadd.f32 %v303, %v719
        %v721 = vpop.f32.mrf.mxu0
        %v722 = vadd.f32 %v307, %v721
        %v723 = vpop.f32.mrf.mxu0
        %v724 = vadd.f32 %v303, %v723
        %v725 = vpop.f32.mrf.mxu0
        %v726 = vadd.f32 %v307, %v725
        %727 = vmatprep.mubr.bf16.mxu0 0
        %728 = vmatmul.mubr.bf16.gmra.mxu0 %v418
        %v729 = vpop.f32.mrf.mxu0
        %v730 = vadd.f32 %v303, %v729
        %v731 = vpop.f32.mrf.mxu0
        %v732 = vadd.f32 %v307, %v731
        %v733 = vpop.f32.mrf.mxu0
        %v734 = vadd.f32 %v303, %v733
        %v735 = vpop.f32.mrf.mxu0
        %v736 = vadd.f32 %v307, %v735
        %737 = vmatprep.mubr.bf16.mxu0 0
        %738 = vmatmul.mubr.bf16.gmra.mxu0 %v421
        %v739 = vpop.f32.mrf.mxu0
        %v740 = vadd.f32 %v303, %v739
        %v741 = vpop.f32.mrf.mxu0
        %v742 = vadd.f32 %v307, %v741
        %v743 = vpop.f32.mrf.mxu0
        %v744 = vadd.f32 %v303, %v743
        %v745 = vpop.f32.mrf.mxu0
        %v746 = vadd.f32 %v307, %v745
        %747 = vmatprep.mubr.bf16.mxu0 0
        %748 = vmatmul.mubr.bf16.gmra.mxu0 %v424
        %v749 = vpop.f32.mrf.mxu0
        %v750 = vadd.f32 %v303, %v749
        %v751 = vpop.f32.mrf.mxu0
        %v752 = vadd.f32 %v307, %v751
        %v753 = vpop.f32.mrf.mxu0
        %v754 = vadd.f32 %v303, %v753
        %v755 = vpop.f32.mrf.mxu0
        %v756 = vadd.f32 %v307, %v755
        %757 = vmatprep.mubr.bf16.mxu0 0
        %758 = vmatmul.mubr.bf16.gmra.mxu0 %v427
        %v759 = vpop.f32.mrf.mxu0
        %v760 = vadd.f32 %v303, %v759
        %v761 = vpop.f32.mrf.mxu0
        %v762 = vadd.f32 %v307, %v761
        %v763 = vpop.f32.mrf.mxu0
        %v764 = vadd.f32 %v303, %v763
        %v765 = vpop.f32.mrf.mxu0
        %v766 = vadd.f32 %v307, %v765
        %767 = vdwg.mxu0
        %768 = vmatprep.subr.bf16.mxu0 0
        %769 = vmatpush1.bf16.msra.mxu0 0
        %770 = vmatprep.subr.bf16.mxu0 0
        %771 = vmatpush1.bf16.msra.mxu0 0
        %772 = vmatprep.subr.bf16.mxu0 0
        %773 = vmatpush1.bf16.msra.mxu0 0
        %774 = vmatprep.subr.bf16.mxu0 0
        %775 = vmatpush1.bf16.msra.mxu0 0
        %776 = vmatprep.subr.bf16.mxu0 0
        %777 = vmatpush1.bf16.msra.mxu0 0
        %778 = vmatprep.subr.bf16.mxu0 0
        %779 = vmatpush1.bf16.msra.mxu0 0
        %780 = vmatprep.subr.bf16.mxu0 %v387
        %781 = vmatpush1.bf16.msra.mxu0 %v386
        %782 = vmatprep.subr.bf16.mxu0 %v379
        %783 = vmatpush1.bf16.msra.mxu0 %v378
        %784 = vmatprep.subr.bf16.mxu0 0
        %785 = vmatpush2.bf16.msra.mxu0 0
        %786 = vmatprep.subr.bf16.mxu0 0
        %787 = vmatpush2.bf16.msra.mxu0 0
        %788 = vmatprep.subr.bf16.mxu0 0
        %789 = vmatpush2.bf16.msra.mxu0 0
        %790 = vmatprep.subr.bf16.mxu0 0
        %791 = vmatpush2.bf16.msra.mxu0 0
        %792 = vmatprep.subr.bf16.mxu0 0
        %793 = vmatpush2.bf16.msra.mxu0 0
        %794 = vmatprep.subr.bf16.mxu0 0
        %795 = vmatpush2.bf16.msra.mxu0 0
        %796 = vmatprep.subr.bf16.mxu0 0
        %797 = vmatpush2.bf16.msra.mxu0 0
        %798 = vmatprep.subr.bf16.mxu0 0
        %799 = vmatpush2.bf16.msra.mxu0 0
        %800 = vmatprep.mubr.bf16.mxu0 0
        %801 = vmatmul.mubr.bf16.gmra.mxu0 %v406
        %v802 = vpop.f32.mrf.mxu0
        %v803 = vadd.f32 %v311, %v802
        %v804 = vpop.f32.mrf.mxu0
        %v805 = vadd.f32 %v315, %v804
        %v806 = vpop.f32.mrf.mxu0
        %v807 = vadd.f32 %v311, %v806
        %v808 = vpop.f32.mrf.mxu0
        %v809 = vadd.f32 %v315, %v808
        %810 = vmatprep.mubr.bf16.mxu0 0
        %811 = vmatmul.mubr.bf16.gmra.mxu0 %v409
        %v812 = vpop.f32.mrf.mxu0
        %v813 = vadd.f32 %v311, %v812
        %v814 = vpop.f32.mrf.mxu0
        %v815 = vadd.f32 %v315, %v814
        %v816 = vpop.f32.mrf.mxu0
        %v817 = vadd.f32 %v311, %v816
        %v818 = vpop.f32.mrf.mxu0
        %v819 = vadd.f32 %v315, %v818
        %820 = vmatprep.mubr.bf16.mxu0 0
        %821 = vmatmul.mubr.bf16.gmra.mxu0 %v412
        %v822 = vpop.f32.mrf.mxu0
        %v823 = vadd.f32 %v311, %v822
        %v824 = vpop.f32.mrf.mxu0
        %v825 = vadd.f32 %v315, %v824
        %v826 = vpop.f32.mrf.mxu0
        %v827 = vadd.f32 %v311, %v826
        %v828 = vpop.f32.mrf.mxu0
        %v829 = vadd.f32 %v315, %v828
        %830 = vmatprep.mubr.bf16.mxu0 0
        %831 = vmatmul.mubr.bf16.gmra.mxu0 %v415
        %v832 = vpop.f32.mrf.mxu0
        %v833 = vadd.f32 %v311, %v832
        %v834 = vpop.f32.mrf.mxu0
        %v835 = vadd.f32 %v315, %v834
        %v836 = vpop.f32.mrf.mxu0
        %v837 = vadd.f32 %v311, %v836
        %v838 = vpop.f32.mrf.mxu0
        %v839 = vadd.f32 %v315, %v838
        %840 = vmatprep.mubr.bf16.mxu0 0
        %841 = vmatmul.mubr.bf16.gmra.mxu0 %v418
        %v842 = vpop.f32.mrf.mxu0
        %v843 = vadd.f32 %v311, %v842
        %v844 = vpop.f32.mrf.mxu0
        %v845 = vadd.f32 %v315, %v844
        %v846 = vpop.f32.mrf.mxu0
        %v847 = vadd.f32 %v311, %v846
        %v848 = vpop.f32.mrf.mxu0
        %v849 = vadd.f32 %v315, %v848
        %850 = vmatprep.mubr.bf16.mxu0 0
        %851 = vmatmul.mubr.bf16.gmra.mxu0 %v421
        %v852 = vpop.f32.mrf.mxu0
        %v853 = vadd.f32 %v311, %v852
        %v854 = vpop.f32.mrf.mxu0
        %v855 = vadd.f32 %v315, %v854
        %v856 = vpop.f32.mrf.mxu0
        %v857 = vadd.f32 %v311, %v856
        %v858 = vpop.f32.mrf.mxu0
        %v859 = vadd.f32 %v315, %v858
        %860 = vmatprep.mubr.bf16.mxu0 0
        %861 = vmatmul.mubr.bf16.gmra.mxu0 %v424
        %v862 = vpop.f32.mrf.mxu0
        %v863 = vadd.f32 %v311, %v862
        %v864 = vpop.f32.mrf.mxu0
        %v865 = vadd.f32 %v315, %v864
        %v866 = vpop.f32.mrf.mxu0
        %v867 = vadd.f32 %v311, %v866
        %v868 = vpop.f32.mrf.mxu0
        %v869 = vadd.f32 %v315, %v868
        %870 = vmatprep.mubr.bf16.mxu0 0
        %871 = vmatmul.mubr.bf16.gmra.mxu0 %v427
        %v872 = vpop.f32.mrf.mxu0
        %v873 = vadd.f32 %v311, %v872
        %v874 = vpop.f32.mrf.mxu0
        %v875 = vadd.f32 %v315, %v874
        %v876 = vpop.f32.mrf.mxu0
        %v877 = vadd.f32 %v311, %v876
        %v878 = vpop.f32.mrf.mxu0
        %v879 = vadd.f32 %v315, %v878
        %880 = vdwg.mxu0
        %v881 = vmax.f32 %v464, 0.0
        %v882 = vmax.f32 %v466, 0.0
        %v883 = vmax.f32 %v577, 0.0
        %v884 = vmax.f32 %v579, 0.0
        %v885 = vmax.f32 %v690, 0.0
        %v886 = vmax.f32 %v692, 0.0
        %v887 = vmax.f32 %v803, 0.0
        %v888 = vmax.f32 %v805, 0.0
        %v889 = vmax.f32 %v468, 0.0
        %v890 = vmax.f32 %v470, 0.0
        %v891 = vmax.f32 %v581, 0.0
        %v892 = vmax.f32 %v583, 0.0
        %v893 = vmax.f32 %v694, 0.0
        %v894 = vmax.f32 %v696, 0.0
        %v895 = vmax.f32 %v807, 0.0
        %v896 = vmax.f32 %v809, 0.0
        %v897 = vmax.f32 %v474, 0.0
        %v898 = vmax.f32 %v476, 0.0
        %v899 = vmax.f32 %v587, 0.0
        %v900 = vmax.f32 %v589, 0.0
        %v901 = vmax.f32 %v700, 0.0
        %v902 = vmax.f32 %v702, 0.0
        %v903 = vmax.f32 %v813, 0.0
        %v904 = vmax.f32 %v815, 0.0
        %v905 = vmax.f32 %v478, 0.0
        %v906 = vmax.f32 %v480, 0.0
        %v907 = vmax.f32 %v591, 0.0
        %v908 = vmax.f32 %v593, 0.0
        %v909 = vmax.f32 %v704, 0.0
        %v910 = vmax.f32 %v706, 0.0
        %v911 = vmax.f32 %v817, 0.0
        %v912 = vmax.f32 %v819, 0.0
        %v913 = vmax.f32 %v484, 0.0
        %v914 = vmax.f32 %v486, 0.0
        %v915 = vmax.f32 %v597, 0.0
        %v916 = vmax.f32 %v599, 0.0
        %v917 = vmax.f32 %v710, 0.0
        %v918 = vmax.f32 %v712, 0.0
        %v919 = vmax.f32 %v823, 0.0
        %v920 = vmax.f32 %v825, 0.0
        %v921 = vmax.f32 %v488, 0.0
        %v922 = vmax.f32 %v490, 0.0
        %v923 = vmax.f32 %v601, 0.0
        %v924 = vmax.f32 %v603, 0.0
        %v925 = vmax.f32 %v714, 0.0
        %v926 = vmax.f32 %v716, 0.0
        %v927 = vmax.f32 %v827, 0.0
        %v928 = vmax.f32 %v829, 0.0
        %v929 = vmax.f32 %v494, 0.0
        %v930 = vmax.f32 %v496, 0.0
        %v931 = vmax.f32 %v607, 0.0
        %v932 = vmax.f32 %v609, 0.0
        %v933 = vmax.f32 %v720, 0.0
        %v934 = vmax.f32 %v722, 0.0
        %v935 = vmax.f32 %v833, 0.0
        %v936 = vmax.f32 %v835, 0.0
        %v937 = vmax.f32 %v498, 0.0
        %v938 = vmax.f32 %v500, 0.0
        %v939 = vmax.f32 %v611, 0.0
        %v940 = vmax.f32 %v613, 0.0
        %v941 = vmax.f32 %v724, 0.0
        %v942 = vmax.f32 %v726, 0.0
        %v943 = vmax.f32 %v837, 0.0
        %v944 = vmax.f32 %v839, 0.0
        %v945 = vmax.f32 %v504, 0.0
        %v946 = vmax.f32 %v506, 0.0
        %v947 = vmax.f32 %v617, 0.0
        %v948 = vmax.f32 %v619, 0.0
        %v949 = vmax.f32 %v730, 0.0
        %v950 = vmax.f32 %v732, 0.0
        %v951 = vmax.f32 %v843, 0.0
        %v952 = vmax.f32 %v845, 0.0
        %v953 = vmax.f32 %v508, 0.0
        %v954 = vmax.f32 %v510, 0.0
        %v955 = vmax.f32 %v621, 0.0
        %v956 = vmax.f32 %v623, 0.0
        %v957 = vmax.f32 %v734, 0.0
        %v958 = vmax.f32 %v736, 0.0
        %v959 = vmax.f32 %v847, 0.0
        %v960 = vmax.f32 %v849, 0.0
        %v961 = vmax.f32 %v514, 0.0
        %v962 = vmax.f32 %v516, 0.0
        %v963 = vmax.f32 %v627, 0.0
        %v964 = vmax.f32 %v629, 0.0
        %v965 = vmax.f32 %v740, 0.0
        %v966 = vmax.f32 %v742, 0.0
        %v967 = vmax.f32 %v853, 0.0
        %v968 = vmax.f32 %v855, 0.0
        %v969 = vmax.f32 %v518, 0.0
        %v970 = vmax.f32 %v520, 0.0
        %v971 = vmax.f32 %v631, 0.0
        %v972 = vmax.f32 %v633, 0.0
        %v973 = vmax.f32 %v744, 0.0
        %v974 = vmax.f32 %v746, 0.0
        %v975 = vmax.f32 %v857, 0.0
        %v976 = vmax.f32 %v859, 0.0
        %v977 = vmax.f32 %v524, 0.0
        %v978 = vmax.f32 %v526, 0.0
        %v979 = vmax.f32 %v637, 0.0
        %v980 = vmax.f32 %v639, 0.0
        %v981 = vmax.f32 %v750, 0.0
        %v982 = vmax.f32 %v752, 0.0
        %v983 = vmax.f32 %v863, 0.0
        %v984 = vmax.f32 %v865, 0.0
        %v985 = vmax.f32 %v528, 0.0
        %v986 = vmax.f32 %v530, 0.0
        %v987 = vmax.f32 %v641, 0.0
        %v988 = vmax.f32 %v643, 0.0
        %v989 = vmax.f32 %v754, 0.0
        %v990 = vmax.f32 %v756, 0.0
        %v991 = vmax.f32 %v867, 0.0
        %v992 = vmax.f32 %v869, 0.0
        %v993 = vmax.f32 %v534, 0.0
        %v994 = vmax.f32 %v536, 0.0
        %v995 = vmax.f32 %v647, 0.0
        %v996 = vmax.f32 %v649, 0.0
        %v997 = vmax.f32 %v760, 0.0
        %v998 = vmax.f32 %v762, 0.0
        %v999 = vmax.f32 %v873, 0.0
        %v1000 = vmax.f32 %v875, 0.0
        %v1001 = vmax.f32 %v538, 0.0
        %v1002 = vmax.f32 %v540, 0.0
        %v1003 = vmax.f32 %v651, 0.0
        %v1004 = vmax.f32 %v653, 0.0
        %v1005 = vmax.f32 %v764, 0.0
        %v1006 = vmax.f32 %v766, 0.0
        %v1007 = vmax.f32 %v877, 0.0
        %v1008 = vmax.f32 %v879, 0.0
        %v1009 = vpack.c.bf16 %v889, %v881
        %v1010 = vpack.c.bf16 %v890, %v882
        %v1011 = vpack.c.bf16 %v891, %v883
        %v1012 = vpack.c.bf16 %v892, %v884
        %v1013 = vpack.c.bf16 %v893, %v885
        %v1014 = vpack.c.bf16 %v894, %v886
        %v1015 = vpack.c.bf16 %v895, %v887
        %v1016 = vpack.c.bf16 %v896, %v888
        %v1017 = vpack.c.bf16 %v905, %v897
        %v1018 = vpack.c.bf16 %v906, %v898
        %v1019 = vpack.c.bf16 %v907, %v899
        %v1020 = vpack.c.bf16 %v908, %v900
        %v1021 = vpack.c.bf16 %v909, %v901
        %v1022 = vpack.c.bf16 %v910, %v902
        %v1023 = vpack.c.bf16 %v911, %v903
        %v1024 = vpack.c.bf16 %v912, %v904
        %v1025 = vpack.c.bf16 %v921, %v913
        %v1026 = vpack.c.bf16 %v922, %v914
        %v1027 = vpack.c.bf16 %v923, %v915
        %v1028 = vpack.c.bf16 %v924, %v916
        %v1029 = vpack.c.bf16 %v925, %v917
        %v1030 = vpack.c.bf16 %v926, %v918
        %v1031 = vpack.c.bf16 %v927, %v919
        %v1032 = vpack.c.bf16 %v928, %v920
        %v1033 = vpack.c.bf16 %v937, %v929
        %v1034 = vpack.c.bf16 %v938, %v930
        %v1035 = vpack.c.bf16 %v939, %v931
        %v1036 = vpack.c.bf16 %v940, %v932
        %v1037 = vpack.c.bf16 %v941, %v933
        %v1038 = vpack.c.bf16 %v942, %v934
        %v1039 = vpack.c.bf16 %v943, %v935
        %v1040 = vpack.c.bf16 %v944, %v936
        %v1041 = vpack.c.bf16 %v953, %v945
        %v1042 = vpack.c.bf16 %v954, %v946
        %v1043 = vpack.c.bf16 %v955, %v947
        %v1044 = vpack.c.bf16 %v956, %v948
        %v1045 = vpack.c.bf16 %v957, %v949
        %v1046 = vpack.c.bf16 %v958, %v950
        %v1047 = vpack.c.bf16 %v959, %v951
        %v1048 = vpack.c.bf16 %v960, %v952
        %v1049 = vpack.c.bf16 %v969, %v961
        %v1050 = vpack.c.bf16 %v970, %v962
        %v1051 = vpack.c.bf16 %v971, %v963
        %v1052 = vpack.c.bf16 %v972, %v964
        %v1053 = vpack.c.bf16 %v973, %v965
        %v1054 = vpack.c.bf16 %v974, %v966
        %v1055 = vpack.c.bf16 %v975, %v967
        %v1056 = vpack.c.bf16 %v976, %v968
        %v1057 = vpack.c.bf16 %v985, %v977
        %v1058 = vpack.c.bf16 %v986, %v978
        %v1059 = vpack.c.bf16 %v987, %v979
        %v1060 = vpack.c.bf16 %v988, %v980
        %v1061 = vpack.c.bf16 %v989, %v981
        %v1062 = vpack.c.bf16 %v990, %v982
        %v1063 = vpack.c.bf16 %v991, %v983
        %v1064 = vpack.c.bf16 %v992, %v984
        %v1065 = vpack.c.bf16 %v1001, %v993
        %v1066 = vpack.c.bf16 %v1002, %v994
        %v1067 = vpack.c.bf16 %v1003, %v995
        %v1068 = vpack.c.bf16 %v1004, %v996
        %v1069 = vpack.c.bf16 %v1005, %v997
        %v1070 = vpack.c.bf16 %v1006, %v998
        %v1071 = vpack.c.bf16 %v1007, %v999
        %v1072 = vpack.c.bf16 %v1008, %v1000
        %v1073 = vld [vmem:[#allocation2] sm:$0xf]
        %v1074 = vld [vmem:[#allocation2 + $0x4] sm:$0xf]
        %v1075 = vld [vmem:[#allocation2 + $0x8] sm:$0xf]
        %v1076 = vld [vmem:[#allocation2 + $0xc] sm:$0xf]
        %v1077 = vld [vmem:[#allocation2 + $0x10] sm:$0xf]
        %v1078 = vld [vmem:[#allocation2 + $0x14] sm:$0xf]
        %v1079 = vld [vmem:[#allocation2 + $0x18] sm:$0xf]
        %v1080 = vld [vmem:[#allocation2 + $0x1c] sm:$0xf]
        %v1081 = vld [vmem:[#allocation2 + $0x20] sm:$0xf]
        %v1082 = vld [vmem:[#allocation2 + $0x24] sm:$0xf]
        %v1083 = vld [vmem:[#allocation2 + $0x28] sm:$0xf]
        %v1084 = vld [vmem:[#allocation2 + $0x2c] sm:$0xf]
        %v1085 = vld [vmem:[#allocation2 + $0x30] sm:$0xf]
        %v1086 = vld [vmem:[#allocation2 + $0x34] sm:$0xf]
        %v1087 = vld [vmem:[#allocation2 + $0x38] sm:$0xf]
        %v1088 = vld [vmem:[#allocation2 + $0x3c] sm:$0xf]
        %v1089 = vld [vmem:[#allocation2 + $0x40] sm:$0xf]
        %v1090 = vld [vmem:[#allocation2 + $0x44] sm:$0xf]
        %v1091 = vld [vmem:[#allocation2 + $0x48] sm:$0xf]
        %v1092 = vld [vmem:[#allocation2 + $0x4c] sm:$0xf]
        %v1093 = vld [vmem:[#allocation2 + $0x50] sm:$0xf]
        %v1094 = vld [vmem:[#allocation2 + $0x54] sm:$0xf]
        %v1095 = vld [vmem:[#allocation2 + $0x58] sm:$0xf]
        %v1096 = vld [vmem:[#allocation2 + $0x5c] sm:$0xf]
        %v1097 = vld [vmem:[#allocation2 + $0x60] sm:$0xf]
        %v1098 = vld [vmem:[#allocation2 + $0x64] sm:$0xf]
        %v1099 = vld [vmem:[#allocation2 + $0x68] sm:$0xf]
        %v1100 = vld [vmem:[#allocation2 + $0x6c] sm:$0xf]
        %v1101 = vld [vmem:[#allocation2 + $0x70] sm:$0xf]
        %v1102 = vld [vmem:[#allocation2 + $0x74] sm:$0xf]
        %v1103 = vld [vmem:[#allocation2 + $0x78] sm:$0xf]
        %v1104 = vld [vmem:[#allocation2 + $0x7c] sm:$0xf]
        %v1105 = vld [vmem:[#allocation2 + $0x80] sm:$0xf]
        %v1106 = vld [vmem:[#allocation2 + $0x84] sm:$0xf]
        %v1107 = vld [vmem:[#allocation2 + $0x88] sm:$0xf]
        %v1108 = vld [vmem:[#allocation2 + $0x8c] sm:$0xf]
        %v1109 = vld [vmem:[#allocation2 + $0x90] sm:$0xf]
        %v1110 = vld [vmem:[#allocation2 + $0x94] sm:$0xf]
        %v1111 = vld [vmem:[#allocation2 + $0x98] sm:$0xf]
        %v1112 = vld [vmem:[#allocation2 + $0x9c] sm:$0xf]
        %v1113 = vld [vmem:[#allocation2 + $0xa0] sm:$0xf]
        %v1114 = vld [vmem:[#allocation2 + $0xa4] sm:$0xf]
        %v1115 = vld [vmem:[#allocation2 + $0xa8] sm:$0xf]
        %v1116 = vld [vmem:[#allocation2 + $0xac] sm:$0xf]
        %v1117 = vld [vmem:[#allocation2 + $0xb0] sm:$0xf]
        %v1118 = vld [vmem:[#allocation2 + $0xb4] sm:$0xf]
        %v1119 = vld [vmem:[#allocation2 + $0xb8] sm:$0xf]
        %v1120 = vld [vmem:[#allocation2 + $0xbc] sm:$0xf]
        %v1121 = vld [vmem:[#allocation2 + $0xc0] sm:$0xf]
        %v1122 = vld [vmem:[#allocation2 + $0xc4] sm:$0xf]
        %v1123 = vld [vmem:[#allocation2 + $0xc8] sm:$0xf]
        %v1124 = vld [vmem:[#allocation2 + $0xcc] sm:$0xf]
        %v1125 = vld [vmem:[#allocation2 + $0xd0] sm:$0xf]
        %v1126 = vld [vmem:[#allocation2 + $0xd4] sm:$0xf]
        %v1127 = vld [vmem:[#allocation2 + $0xd8] sm:$0xf]
        %v1128 = vld [vmem:[#allocation2 + $0xdc] sm:$0xf]
        %v1129 = vld [vmem:[#allocation2 + $0xe0] sm:$0xf]
        %v1130 = vld [vmem:[#allocation2 + $0xe4] sm:$0xf]
        %v1131 = vld [vmem:[#allocation2 + $0xe8] sm:$0xf]
        %v1132 = vld [vmem:[#allocation2 + $0xec] sm:$0xf]
        %v1133 = vld [vmem:[#allocation2 + $0xf0] sm:$0xf]
        %v1134 = vld [vmem:[#allocation2 + $0xf4] sm:$0xf]
        %v1135 = vld [vmem:[#allocation2 + $0xf8] sm:$0xf]
        %v1136 = vld [vmem:[#allocation2 + $0xfc] sm:$0xf]
        %v1137 = vld [vmem:[#allocation2 + $0x100] sm:$0xf]
        %v1138 = vld [vmem:[#allocation2 + $0x104] sm:$0xf]
        %v1139 = vld [vmem:[#allocation2 + $0x108] sm:$0xf]
        %v1140 = vld [vmem:[#allocation2 + $0x10c] sm:$0xf]
        %v1141 = vld [vmem:[#allocation2 + $0x110] sm:$0xf]
        %v1142 = vld [vmem:[#allocation2 + $0x114] sm:$0xf]
        %v1143 = vld [vmem:[#allocation2 + $0x118] sm:$0xf]
        %v1144 = vld [vmem:[#allocation2 + $0x11c] sm:$0xf]
        %v1145 = vld [vmem:[#allocation2 + $0x120] sm:$0xf]
        %v1146 = vld [vmem:[#allocation2 + $0x124] sm:$0xf]
        %v1147 = vld [vmem:[#allocation2 + $0x128] sm:$0xf]
        %v1148 = vld [vmem:[#allocation2 + $0x12c] sm:$0xf]
        %v1149 = vld [vmem:[#allocation2 + $0x130] sm:$0xf]
        %v1150 = vld [vmem:[#allocation2 + $0x134] sm:$0xf]
        %v1151 = vld [vmem:[#allocation2 + $0x138] sm:$0xf]
        %v1152 = vld [vmem:[#allocation2 + $0x13c] sm:$0xf]
        %v1153 = vld [vmem:[#allocation2 + $0x140] sm:$0xf]
        %v1154 = vld [vmem:[#allocation2 + $0x144] sm:$0xf]
        %v1155 = vld [vmem:[#allocation2 + $0x148] sm:$0xf]
        %v1156 = vld [vmem:[#allocation2 + $0x14c] sm:$0xf]
        %v1157 = vld [vmem:[#allocation2 + $0x150] sm:$0xf]
        %v1158 = vld [vmem:[#allocation2 + $0x154] sm:$0xf]
        %v1159 = vld [vmem:[#allocation2 + $0x158] sm:$0xf]
        %v1160 = vld [vmem:[#allocation2 + $0x15c] sm:$0xf]
        %v1161 = vld [vmem:[#allocation2 + $0x160] sm:$0xf]
        %v1162 = vld [vmem:[#allocation2 + $0x164] sm:$0xf]
        %v1163 = vld [vmem:[#allocation2 + $0x168] sm:$0xf]
        %v1164 = vld [vmem:[#allocation2 + $0x16c] sm:$0xf]
        %v1165 = vld [vmem:[#allocation2 + $0x170] sm:$0xf]
        %v1166 = vld [vmem:[#allocation2 + $0x174] sm:$0xf]
        %v1167 = vld [vmem:[#allocation2 + $0x178] sm:$0xf]
        %v1168 = vld [vmem:[#allocation2 + $0x17c] sm:$0xf]
        %v1169 = vld [vmem:[#allocation2 + $0x180] sm:$0xf]
        %v1170 = vld [vmem:[#allocation2 + $0x184] sm:$0xf]
        %v1171 = vld [vmem:[#allocation2 + $0x188] sm:$0xf]
        %v1172 = vld [vmem:[#allocation2 + $0x18c] sm:$0xf]
        %v1173 = vld [vmem:[#allocation2 + $0x190] sm:$0xf]
        %v1174 = vld [vmem:[#allocation2 + $0x194] sm:$0xf]
        %v1175 = vld [vmem:[#allocation2 + $0x198] sm:$0xf]
        %v1176 = vld [vmem:[#allocation2 + $0x19c] sm:$0xf]
        %v1177 = vld [vmem:[#allocation2 + $0x1a0] sm:$0xf]
        %v1178 = vld [vmem:[#allocation2 + $0x1a4] sm:$0xf]
        %v1179 = vld [vmem:[#allocation2 + $0x1a8] sm:$0xf]
        %v1180 = vld [vmem:[#allocation2 + $0x1ac] sm:$0xf]
        %v1181 = vld [vmem:[#allocation2 + $0x1b0] sm:$0xf]
        %v1182 = vld [vmem:[#allocation2 + $0x1b4] sm:$0xf]
        %v1183 = vld [vmem:[#allocation2 + $0x1b8] sm:$0xf]
        %v1184 = vld [vmem:[#allocation2 + $0x1bc] sm:$0xf]
        %v1185 = vld [vmem:[#allocation2 + $0x1c0] sm:$0xf]
        %v1186 = vld [vmem:[#allocation2 + $0x1c4] sm:$0xf]
        %v1187 = vld [vmem:[#allocation2 + $0x1c8] sm:$0xf]
        %v1188 = vld [vmem:[#allocation2 + $0x1cc] sm:$0xf]
        %v1189 = vld [vmem:[#allocation2 + $0x1d0] sm:$0xf]
        %v1190 = vld [vmem:[#allocation2 + $0x1d4] sm:$0xf]
        %v1191 = vld [vmem:[#allocation2 + $0x1d8] sm:$0xf]
        %v1192 = vld [vmem:[#allocation2 + $0x1dc] sm:$0xf]
        %v1193 = vld [vmem:[#allocation2 + $0x1e0] sm:$0xf]
        %v1194 = vld [vmem:[#allocation2 + $0x1e4] sm:$0xf]
        %v1195 = vld [vmem:[#allocation2 + $0x1e8] sm:$0xf]
        %v1196 = vld [vmem:[#allocation2 + $0x1ec] sm:$0xf]
        %v1197 = vld [vmem:[#allocation2 + $0x1f0] sm:$0xf]
        %v1198 = vld [vmem:[#allocation2 + $0x1f4] sm:$0xf]
        %v1199 = vld [vmem:[#allocation2 + $0x1f8] sm:$0xf]
        %v1200 = vld [vmem:[#allocation2 + $0x1fc] sm:$0xf]
        %v1201 = vld [vmem:[%s4] sm:$0x1]
        %v1203 = vlaneseq
        %v1204 = vshrl.u32 %v1203, 7
        %v1205 = vsub.s32 0, %v1204
        %v1206 = vrot.slane %v1201, %v1205
        %v1336 = vunpack.c.l.b16 %v1073
        %v1337 = vunpack.c.l.b16 %v1074
        %v1338 = vunpack.c.l.b16 %v1075
        %v1339 = vunpack.c.l.b16 %v1076
        %v1340 = vunpack.c.l.b16 %v1077
        %v1341 = vunpack.c.l.b16 %v1078
        %v1342 = vunpack.c.l.b16 %v1079
        %v1343 = vunpack.c.l.b16 %v1080
        %v1344 = vunpack.c.l.b16 %v1081
        %v1345 = vunpack.c.l.b16 %v1082
        %v1346 = vunpack.c.l.b16 %v1083
        %v1347 = vunpack.c.l.b16 %v1084
        %v1348 = vunpack.c.l.b16 %v1085
        %v1349 = vunpack.c.l.b16 %v1086
        %v1350 = vunpack.c.l.b16 %v1087
        %v1351 = vunpack.c.l.b16 %v1088
        %v1352 = vunpack.c.l.b16 %v1089
        %v1353 = vunpack.c.l.b16 %v1090
        %v1354 = vunpack.c.l.b16 %v1091
        %v1355 = vunpack.c.l.b16 %v1092
        %v1356 = vunpack.c.l.b16 %v1093
        %v1357 = vunpack.c.l.b16 %v1094
        %v1358 = vunpack.c.l.b16 %v1095
        %v1359 = vunpack.c.l.b16 %v1096
        %v1360 = vunpack.c.l.b16 %v1097
        %v1361 = vunpack.c.l.b16 %v1098
        %v1362 = vunpack.c.l.b16 %v1099
        %v1363 = vunpack.c.l.b16 %v1100
        %v1364 = vunpack.c.l.b16 %v1101
        %v1365 = vunpack.c.l.b16 %v1102
        %v1366 = vunpack.c.l.b16 %v1103
        %v1367 = vunpack.c.l.b16 %v1104
        %v1368 = vunpack.c.l.b16 %v1105
        %v1369 = vunpack.c.l.b16 %v1106
        %v1370 = vunpack.c.l.b16 %v1107
        %v1371 = vunpack.c.l.b16 %v1108
        %v1372 = vunpack.c.l.b16 %v1109
        %v1373 = vunpack.c.l.b16 %v1110
        %v1374 = vunpack.c.l.b16 %v1111
        %v1375 = vunpack.c.l.b16 %v1112
        %v1376 = vunpack.c.l.b16 %v1113
        %v1377 = vunpack.c.l.b16 %v1114
        %v1378 = vunpack.c.l.b16 %v1115
        %v1379 = vunpack.c.l.b16 %v1116
        %v1380 = vunpack.c.l.b16 %v1117
        %v1381 = vunpack.c.l.b16 %v1118
        %v1382 = vunpack.c.l.b16 %v1119
        %v1383 = vunpack.c.l.b16 %v1120
        %v1384 = vunpack.c.l.b16 %v1121
        %v1385 = vunpack.c.l.b16 %v1122
        %v1386 = vunpack.c.l.b16 %v1123
        %v1387 = vunpack.c.l.b16 %v1124
        %v1388 = vunpack.c.l.b16 %v1125
        %v1389 = vunpack.c.l.b16 %v1126
        %v1390 = vunpack.c.l.b16 %v1127
        %v1391 = vunpack.c.l.b16 %v1128
        %v1392 = vunpack.c.l.b16 %v1129
        %v1393 = vunpack.c.l.b16 %v1130
        %v1394 = vunpack.c.l.b16 %v1131
        %v1395 = vunpack.c.l.b16 %v1132
        %v1396 = vunpack.c.l.b16 %v1133
        %v1397 = vunpack.c.l.b16 %v1134
        %v1398 = vunpack.c.l.b16 %v1135
        %v1399 = vunpack.c.l.b16 %v1136
        %v1400 = vunpack.c.l.b16 %v1137
        %v1401 = vunpack.c.l.b16 %v1138
        %v1402 = vunpack.c.l.b16 %v1139
        %v1403 = vunpack.c.l.b16 %v1140
        %v1404 = vunpack.c.l.b16 %v1141
        %v1405 = vunpack.c.l.b16 %v1142
        %v1406 = vunpack.c.l.b16 %v1143
        %v1407 = vunpack.c.l.b16 %v1144
        %v1408 = vunpack.c.l.b16 %v1145
        %v1409 = vunpack.c.l.b16 %v1146
        %v1410 = vunpack.c.l.b16 %v1147
        %v1411 = vunpack.c.l.b16 %v1148
        %v1412 = vunpack.c.l.b16 %v1149
        %v1413 = vunpack.c.l.b16 %v1150
        %v1414 = vunpack.c.l.b16 %v1151
        %v1415 = vunpack.c.l.b16 %v1152
        %v1416 = vunpack.c.l.b16 %v1153
        %v1417 = vunpack.c.l.b16 %v1154
        %v1418 = vunpack.c.l.b16 %v1155
        %v1419 = vunpack.c.l.b16 %v1156
        %v1420 = vunpack.c.l.b16 %v1157
        %v1421 = vunpack.c.l.b16 %v1158
        %v1422 = vunpack.c.l.b16 %v1159
        %v1423 = vunpack.c.l.b16 %v1160
        %v1424 = vunpack.c.l.b16 %v1161
        %v1425 = vunpack.c.l.b16 %v1162
        %v1426 = vunpack.c.l.b16 %v1163
        %v1427 = vunpack.c.l.b16 %v1164
        %v1428 = vunpack.c.l.b16 %v1165
        %v1429 = vunpack.c.l.b16 %v1166
        %v1430 = vunpack.c.l.b16 %v1167
        %v1431 = vunpack.c.l.b16 %v1168
        %v1432 = vunpack.c.l.b16 %v1169
        %v1433 = vunpack.c.l.b16 %v1170
        %v1434 = vunpack.c.l.b16 %v1171
        %v1435 = vunpack.c.l.b16 %v1172
        %v1436 = vunpack.c.l.b16 %v1173
        %v1437 = vunpack.c.l.b16 %v1174
        %v1438 = vunpack.c.l.b16 %v1175
        %v1439 = vunpack.c.l.b16 %v1176
        %v1440 = vunpack.c.l.b16 %v1177
        %v1441 = vunpack.c.l.b16 %v1178
        %v1442 = vunpack.c.l.b16 %v1179
        %v1443 = vunpack.c.l.b16 %v1180
        %v1444 = vunpack.c.l.b16 %v1181
        %v1445 = vunpack.c.l.b16 %v1182
        %v1446 = vunpack.c.l.b16 %v1183
        %v1447 = vunpack.c.l.b16 %v1184
        %v1448 = vunpack.c.l.b16 %v1185
        %v1449 = vunpack.c.l.b16 %v1186
        %v1450 = vunpack.c.l.b16 %v1187
        %v1451 = vunpack.c.l.b16 %v1188
        %v1452 = vunpack.c.l.b16 %v1189
        %v1453 = vunpack.c.l.b16 %v1190
        %v1454 = vunpack.c.l.b16 %v1191
        %v1455 = vunpack.c.l.b16 %v1192
        %v1456 = vunpack.c.l.b16 %v1193
        %v1457 = vunpack.c.l.b16 %v1194
        %v1458 = vunpack.c.l.b16 %v1195
        %v1459 = vunpack.c.l.b16 %v1196
        %v1460 = vunpack.c.l.b16 %v1197
        %v1461 = vunpack.c.l.b16 %v1198
        %v1462 = vunpack.c.l.b16 %v1199
        %v1463 = vunpack.c.l.b16 %v1200
        %v1464 = vpack.c.b16 %v1337, %v1336
        %v1465 = vpack.c.b16 %v1339, %v1338
        %v1466 = vpack.c.b16 %v1341, %v1340
        %v1467 = vpack.c.b16 %v1343, %v1342
        %v1468 = vpack.c.b16 %v1345, %v1344
        %v1469 = vpack.c.b16 %v1347, %v1346
        %v1470 = vpack.c.b16 %v1349, %v1348
        %v1471 = vpack.c.b16 %v1351, %v1350
        %v1472 = vpack.c.b16 %v1353, %v1352
        %v1473 = vpack.c.b16 %v1355, %v1354
        %v1474 = vpack.c.b16 %v1357, %v1356
        %v1475 = vpack.c.b16 %v1359, %v1358
        %v1476 = vpack.c.b16 %v1361, %v1360
        %v1477 = vpack.c.b16 %v1363, %v1362
        %v1478 = vpack.c.b16 %v1365, %v1364
        %v1479 = vpack.c.b16 %v1367, %v1366
        %v1480 = vpack.c.b16 %v1369, %v1368
        %v1481 = vpack.c.b16 %v1371, %v1370
        %v1482 = vpack.c.b16 %v1373, %v1372
        %v1483 = vpack.c.b16 %v1375, %v1374
        %v1484 = vpack.c.b16 %v1377, %v1376
        %v1485 = vpack.c.b16 %v1379, %v1378
        %v1486 = vpack.c.b16 %v1381, %v1380
        %v1487 = vpack.c.b16 %v1383, %v1382
        %v1488 = vpack.c.b16 %v1385, %v1384
        %v1489 = vpack.c.b16 %v1387, %v1386
        %v1490 = vpack.c.b16 %v1389, %v1388
        %v1491 = vpack.c.b16 %v1391, %v1390
        %v1492 = vpack.c.b16 %v1393, %v1392
        %v1493 = vpack.c.b16 %v1395, %v1394
        %v1494 = vpack.c.b16 %v1397, %v1396
        %v1495 = vpack.c.b16 %v1399, %v1398
        %v1496 = vpack.c.b16 %v1401, %v1400
        %v1497 = vpack.c.b16 %v1403, %v1402
        %v1498 = vpack.c.b16 %v1405, %v1404
        %v1499 = vpack.c.b16 %v1407, %v1406
        %v1500 = vpack.c.b16 %v1409, %v1408
        %v1501 = vpack.c.b16 %v1411, %v1410
        %v1502 = vpack.c.b16 %v1413, %v1412
        %v1503 = vpack.c.b16 %v1415, %v1414
        %v1504 = vpack.c.b16 %v1417, %v1416
        %v1505 = vpack.c.b16 %v1419, %v1418
        %v1506 = vpack.c.b16 %v1421, %v1420
        %v1507 = vpack.c.b16 %v1423, %v1422
        %v1508 = vpack.c.b16 %v1425, %v1424
        %v1509 = vpack.c.b16 %v1427, %v1426
        %v1510 = vpack.c.b16 %v1429, %v1428
        %v1511 = vpack.c.b16 %v1431, %v1430
        %v1512 = vpack.c.b16 %v1433, %v1432
        %v1513 = vpack.c.b16 %v1435, %v1434
        %v1514 = vpack.c.b16 %v1437, %v1436
        %v1515 = vpack.c.b16 %v1439, %v1438
        %v1516 = vpack.c.b16 %v1441, %v1440
        %v1517 = vpack.c.b16 %v1443, %v1442
        %v1518 = vpack.c.b16 %v1445, %v1444
        %v1519 = vpack.c.b16 %v1447, %v1446
        %v1520 = vpack.c.b16 %v1449, %v1448
        %v1521 = vpack.c.b16 %v1451, %v1450
        %v1522 = vpack.c.b16 %v1453, %v1452
        %v1523 = vpack.c.b16 %v1455, %v1454
        %v1524 = vpack.c.b16 %v1457, %v1456
        %v1525 = vpack.c.b16 %v1459, %v1458
        %v1526 = vpack.c.b16 %v1461, %v1460
        %v1527 = vpack.c.b16 %v1463, %v1462
        %1592 = vmatprep.subr.bf16.mxu0 0
        %1593 = vmatpush1.bf16.msra.mxu0 %v1471
        %1594 = vmatprep.subr.bf16.mxu0 0
        %1595 = vmatpush1.bf16.msra.mxu0 %v1470
        %1596 = vmatprep.subr.bf16.mxu0 0
        %1597 = vmatpush1.bf16.msra.mxu0 %v1469
        %1598 = vmatprep.subr.bf16.mxu0 0
        %1599 = vmatpush1.bf16.msra.mxu0 %v1468
        %1600 = vmatprep.subr.bf16.mxu0 0
        %1601 = vmatpush1.bf16.msra.mxu0 %v1467
        %1602 = vmatprep.subr.bf16.mxu0 0
        %1603 = vmatpush1.bf16.msra.mxu0 %v1466
        %1604 = vmatprep.subr.bf16.mxu0 0
        %1605 = vmatpush1.bf16.msra.mxu0 %v1465
        %1606 = vmatprep.subr.bf16.mxu0 0
        %1607 = vmatpush1.bf16.msra.mxu0 %v1464
        %1608 = vmatprep.subr.bf16.mxu0 0
        %1609 = vmatpush2.bf16.msra.mxu0 %v1479
        %1610 = vmatprep.subr.bf16.mxu0 0
        %1611 = vmatpush2.bf16.msra.mxu0 %v1478
        %1612 = vmatprep.subr.bf16.mxu0 0
        %1613 = vmatpush2.bf16.msra.mxu0 %v1477
        %1614 = vmatprep.subr.bf16.mxu0 0
        %1615 = vmatpush2.bf16.msra.mxu0 %v1476
        %1616 = vmatprep.subr.bf16.mxu0 0
        %1617 = vmatpush2.bf16.msra.mxu0 %v1475
        %1618 = vmatprep.subr.bf16.mxu0 0
        %1619 = vmatpush2.bf16.msra.mxu0 %v1474
        %1620 = vmatprep.subr.bf16.mxu0 0
        %1621 = vmatpush2.bf16.msra.mxu0 %v1473
        %1622 = vmatprep.subr.bf16.mxu0 0
        %1623 = vmatpush2.bf16.msra.mxu0 %v1472
        %1624 = vmatprep.mubr.bf16.mxu0 %v1010
        %1625 = vmatmul.mubr.bf16.gmra.mxu0 %v1009
        %v1626 = vpop.f32.mrf.mxu0
        %v1627 = vadd.f32 %v1206, %v1626
        %v1628 = vpop.f32.mrf.mxu0
        %v1629 = vpop.f32.mrf.mxu0
        %v1630 = vadd.f32 %v1206, %v1629
        %v1631 = vpop.f32.mrf.mxu0
        %1632 = vmatprep.mubr.bf16.mxu0 %v1018
        %1633 = vmatmul.mubr.bf16.gmra.mxu0 %v1017
        %v1634 = vpop.f32.mrf.mxu0
        %v1635 = vadd.f32 %v1206, %v1634
        %v1636 = vpop.f32.mrf.mxu0
        %v1637 = vpop.f32.mrf.mxu0
        %v1638 = vadd.f32 %v1206, %v1637
        %v1639 = vpop.f32.mrf.mxu0
        %1640 = vmatprep.mubr.bf16.mxu0 %v1026
        %1641 = vmatmul.mubr.bf16.gmra.mxu0 %v1025
        %v1642 = vpop.f32.mrf.mxu0
        %v1643 = vadd.f32 %v1206, %v1642
        %v1644 = vpop.f32.mrf.mxu0
        %v1645 = vpop.f32.mrf.mxu0
        %v1646 = vadd.f32 %v1206, %v1645
        %v1647 = vpop.f32.mrf.mxu0
        %1648 = vmatprep.mubr.bf16.mxu0 %v1034
        %1649 = vmatmul.mubr.bf16.gmra.mxu0 %v1033
        %v1650 = vpop.f32.mrf.mxu0
        %v1651 = vadd.f32 %v1206, %v1650
        %v1652 = vpop.f32.mrf.mxu0
        %v1653 = vpop.f32.mrf.mxu0
        %v1654 = vadd.f32 %v1206, %v1653
        %v1655 = vpop.f32.mrf.mxu0
        %1656 = vmatprep.mubr.bf16.mxu0 %v1042
        %1657 = vmatmul.mubr.bf16.gmra.mxu0 %v1041
        %v1658 = vpop.f32.mrf.mxu0
        %v1659 = vadd.f32 %v1206, %v1658
        %v1660 = vpop.f32.mrf.mxu0
        %v1661 = vpop.f32.mrf.mxu0
        %v1662 = vadd.f32 %v1206, %v1661
        %v1663 = vpop.f32.mrf.mxu0
        %1664 = vmatprep.mubr.bf16.mxu0 %v1050
        %1665 = vmatmul.mubr.bf16.gmra.mxu0 %v1049
        %v1666 = vpop.f32.mrf.mxu0
        %v1667 = vadd.f32 %v1206, %v1666
        %v1668 = vpop.f32.mrf.mxu0
        %v1669 = vpop.f32.mrf.mxu0
        %v1670 = vadd.f32 %v1206, %v1669
        %v1671 = vpop.f32.mrf.mxu0
        %1672 = vmatprep.mubr.bf16.mxu0 %v1058
        %1673 = vmatmul.mubr.bf16.gmra.mxu0 %v1057
        %v1674 = vpop.f32.mrf.mxu0
        %v1675 = vadd.f32 %v1206, %v1674
        %v1676 = vpop.f32.mrf.mxu0
        %v1677 = vpop.f32.mrf.mxu0
        %v1678 = vadd.f32 %v1206, %v1677
        %v1679 = vpop.f32.mrf.mxu0
        %1680 = vmatprep.mubr.bf16.mxu0 %v1066
        %1681 = vmatmul.mubr.bf16.gmra.mxu0 %v1065
        %v1682 = vpop.f32.mrf.mxu0
        %v1683 = vadd.f32 %v1206, %v1682
        %v1684 = vpop.f32.mrf.mxu0
        %v1685 = vpop.f32.mrf.mxu0
        %v1686 = vadd.f32 %v1206, %v1685
        %v1687 = vpop.f32.mrf.mxu0
        %1688 = vdwg.mxu0
        %1689 = vmatprep.subr.bf16.mxu0 0
        %1690 = vmatpush1.bf16.msra.mxu0 %v1487
        %1691 = vmatprep.subr.bf16.mxu0 0
        %1692 = vmatpush1.bf16.msra.mxu0 %v1486
        %1693 = vmatprep.subr.bf16.mxu0 0
        %1694 = vmatpush1.bf16.msra.mxu0 %v1485
        %1695 = vmatprep.subr.bf16.mxu0 0
        %1696 = vmatpush1.bf16.msra.mxu0 %v1484
        %1697 = vmatprep.subr.bf16.mxu0 0
        %1698 = vmatpush1.bf16.msra.mxu0 %v1483
        %1699 = vmatprep.subr.bf16.mxu0 0
        %1700 = vmatpush1.bf16.msra.mxu0 %v1482
        %1701 = vmatprep.subr.bf16.mxu0 0
        %1702 = vmatpush1.bf16.msra.mxu0 %v1481
        %1703 = vmatprep.subr.bf16.mxu0 0
        %1704 = vmatpush1.bf16.msra.mxu0 %v1480
        %1705 = vmatprep.subr.bf16.mxu0 0
        %1706 = vmatpush2.bf16.msra.mxu0 %v1495
        %1707 = vmatprep.subr.bf16.mxu0 0
        %1708 = vmatpush2.bf16.msra.mxu0 %v1494
        %1709 = vmatprep.subr.bf16.mxu0 0
        %1710 = vmatpush2.bf16.msra.mxu0 %v1493
        %1711 = vmatprep.subr.bf16.mxu0 0
        %1712 = vmatpush2.bf16.msra.mxu0 %v1492
        %1713 = vmatprep.subr.bf16.mxu0 0
        %1714 = vmatpush2.bf16.msra.mxu0 %v1491
        %1715 = vmatprep.subr.bf16.mxu0 0
        %1716 = vmatpush2.bf16.msra.mxu0 %v1490
        %1717 = vmatprep.subr.bf16.mxu0 0
        %1718 = vmatpush2.bf16.msra.mxu0 %v1489
        %1719 = vmatprep.subr.bf16.mxu0 0
        %1720 = vmatpush2.bf16.msra.mxu0 %v1488
        %1721 = vmatprep.mubr.bf16.mxu0 %v1012
        %1722 = vmatmul.mubr.bf16.gmra.mxu0 %v1011
        %v1723 = vpop.f32.mrf.mxu0
        %v1724 = vadd.f32 %v1627, %v1723
        %v1725 = vpop.f32.mrf.mxu0
        %v1726 = vpop.f32.mrf.mxu0
        %v1727 = vadd.f32 %v1630, %v1726
        %v1728 = vpop.f32.mrf.mxu0
        %1729 = vmatprep.mubr.bf16.mxu0 %v1020
        %1730 = vmatmul.mubr.bf16.gmra.mxu0 %v1019
        %v1731 = vpop.f32.mrf.mxu0
        %v1732 = vadd.f32 %v1635, %v1731
        %v1733 = vpop.f32.mrf.mxu0
        %v1734 = vpop.f32.mrf.mxu0
        %v1735 = vadd.f32 %v1638, %v1734
        %v1736 = vpop.f32.mrf.mxu0
        %1737 = vmatprep.mubr.bf16.mxu0 %v1028
        %1738 = vmatmul.mubr.bf16.gmra.mxu0 %v1027
        %v1739 = vpop.f32.mrf.mxu0
        %v1740 = vadd.f32 %v1643, %v1739
        %v1741 = vpop.f32.mrf.mxu0
        %v1742 = vpop.f32.mrf.mxu0
        %v1743 = vadd.f32 %v1646, %v1742
        %v1744 = vpop.f32.mrf.mxu0
        %1745 = vmatprep.mubr.bf16.mxu0 %v1036
        %1746 = vmatmul.mubr.bf16.gmra.mxu0 %v1035
        %v1747 = vpop.f32.mrf.mxu0
        %v1748 = vadd.f32 %v1651, %v1747
        %v1749 = vpop.f32.mrf.mxu0
        %v1750 = vpop.f32.mrf.mxu0
        %v1751 = vadd.f32 %v1654, %v1750
        %v1752 = vpop.f32.mrf.mxu0
        %1753 = vmatprep.mubr.bf16.mxu0 %v1044
        %1754 = vmatmul.mubr.bf16.gmra.mxu0 %v1043
        %v1755 = vpop.f32.mrf.mxu0
        %v1756 = vadd.f32 %v1659, %v1755
        %v1757 = vpop.f32.mrf.mxu0
        %v1758 = vpop.f32.mrf.mxu0
        %v1759 = vadd.f32 %v1662, %v1758
        %v1760 = vpop.f32.mrf.mxu0
        %1761 = vmatprep.mubr.bf16.mxu0 %v1052
        %1762 = vmatmul.mubr.bf16.gmra.mxu0 %v1051
        %v1763 = vpop.f32.mrf.mxu0
        %v1764 = vadd.f32 %v1667, %v1763
        %v1765 = vpop.f32.mrf.mxu0
        %v1766 = vpop.f32.mrf.mxu0
        %v1767 = vadd.f32 %v1670, %v1766
        %v1768 = vpop.f32.mrf.mxu0
        %1769 = vmatprep.mubr.bf16.mxu0 %v1060
        %1770 = vmatmul.mubr.bf16.gmra.mxu0 %v1059
        %v1771 = vpop.f32.mrf.mxu0
        %v1772 = vadd.f32 %v1675, %v1771
        %v1773 = vpop.f32.mrf.mxu0
        %v1774 = vpop.f32.mrf.mxu0
        %v1775 = vadd.f32 %v1678, %v1774
        %v1776 = vpop.f32.mrf.mxu0
        %1777 = vmatprep.mubr.bf16.mxu0 %v1068
        %1778 = vmatmul.mubr.bf16.gmra.mxu0 %v1067
        %v1779 = vpop.f32.mrf.mxu0
        %v1780 = vadd.f32 %v1683, %v1779
        %v1781 = vpop.f32.mrf.mxu0
        %v1782 = vpop.f32.mrf.mxu0
        %v1783 = vadd.f32 %v1686, %v1782
        %v1784 = vpop.f32.mrf.mxu0
        %1785 = vdwg.mxu0
        %1786 = vmatprep.subr.bf16.mxu0 0
        %1787 = vmatpush1.bf16.msra.mxu0 %v1503
        %1788 = vmatprep.subr.bf16.mxu0 0
        %1789 = vmatpush1.bf16.msra.mxu0 %v1502
        %1790 = vmatprep.subr.bf16.mxu0 0
        %1791 = vmatpush1.bf16.msra.mxu0 %v1501
        %1792 = vmatprep.subr.bf16.mxu0 0
        %1793 = vmatpush1.bf16.msra.mxu0 %v1500
        %1794 = vmatprep.subr.bf16.mxu0 0
        %1795 = vmatpush1.bf16.msra.mxu0 %v1499
        %1796 = vmatprep.subr.bf16.mxu0 0
        %1797 = vmatpush1.bf16.msra.mxu0 %v1498
        %1798 = vmatprep.subr.bf16.mxu0 0
        %1799 = vmatpush1.bf16.msra.mxu0 %v1497
        %1800 = vmatprep.subr.bf16.mxu0 0
        %1801 = vmatpush1.bf16.msra.mxu0 %v1496
        %1802 = vmatprep.subr.bf16.mxu0 0
        %1803 = vmatpush2.bf16.msra.mxu0 %v1511
        %1804 = vmatprep.subr.bf16.mxu0 0
        %1805 = vmatpush2.bf16.msra.mxu0 %v1510
        %1806 = vmatprep.subr.bf16.mxu0 0
        %1807 = vmatpush2.bf16.msra.mxu0 %v1509
        %1808 = vmatprep.subr.bf16.mxu0 0
        %1809 = vmatpush2.bf16.msra.mxu0 %v1508
        %1810 = vmatprep.subr.bf16.mxu0 0
        %1811 = vmatpush2.bf16.msra.mxu0 %v1507
        %1812 = vmatprep.subr.bf16.mxu0 0
        %1813 = vmatpush2.bf16.msra.mxu0 %v1506
        %1814 = vmatprep.subr.bf16.mxu0 0
        %1815 = vmatpush2.bf16.msra.mxu0 %v1505
        %1816 = vmatprep.subr.bf16.mxu0 0
        %1817 = vmatpush2.bf16.msra.mxu0 %v1504
        %1818 = vmatprep.mubr.bf16.mxu0 %v1014
        %1819 = vmatmul.mubr.bf16.gmra.mxu0 %v1013
        %v1820 = vpop.f32.mrf.mxu0
        %v1821 = vadd.f32 %v1724, %v1820
        %v1822 = vpop.f32.mrf.mxu0
        %v1823 = vpop.f32.mrf.mxu0
        %v1824 = vadd.f32 %v1727, %v1823
        %v1825 = vpop.f32.mrf.mxu0
        %1826 = vmatprep.mubr.bf16.mxu0 %v1022
        %1827 = vmatmul.mubr.bf16.gmra.mxu0 %v1021
        %v1828 = vpop.f32.mrf.mxu0
        %v1829 = vadd.f32 %v1732, %v1828
        %v1830 = vpop.f32.mrf.mxu0
        %v1831 = vpop.f32.mrf.mxu0
        %v1832 = vadd.f32 %v1735, %v1831
        %v1833 = vpop.f32.mrf.mxu0
        %1834 = vmatprep.mubr.bf16.mxu0 %v1030
        %1835 = vmatmul.mubr.bf16.gmra.mxu0 %v1029
        %v1836 = vpop.f32.mrf.mxu0
        %v1837 = vadd.f32 %v1740, %v1836
        %v1838 = vpop.f32.mrf.mxu0
        %v1839 = vpop.f32.mrf.mxu0
        %v1840 = vadd.f32 %v1743, %v1839
        %v1841 = vpop.f32.mrf.mxu0
        %1842 = vmatprep.mubr.bf16.mxu0 %v1038
        %1843 = vmatmul.mubr.bf16.gmra.mxu0 %v1037
        %v1844 = vpop.f32.mrf.mxu0
        %v1845 = vadd.f32 %v1748, %v1844
        %v1846 = vpop.f32.mrf.mxu0
        %v1847 = vpop.f32.mrf.mxu0
        %v1848 = vadd.f32 %v1751, %v1847
        %v1849 = vpop.f32.mrf.mxu0
        %1850 = vmatprep.mubr.bf16.mxu0 %v1046
        %1851 = vmatmul.mubr.bf16.gmra.mxu0 %v1045
        %v1852 = vpop.f32.mrf.mxu0
        %v1853 = vadd.f32 %v1756, %v1852
        %v1854 = vpop.f32.mrf.mxu0
        %v1855 = vpop.f32.mrf.mxu0
        %v1856 = vadd.f32 %v1759, %v1855
        %v1857 = vpop.f32.mrf.mxu0
        %1858 = vmatprep.mubr.bf16.mxu0 %v1054
        %1859 = vmatmul.mubr.bf16.gmra.mxu0 %v1053
        %v1860 = vpop.f32.mrf.mxu0
        %v1861 = vadd.f32 %v1764, %v1860
        %v1862 = vpop.f32.mrf.mxu0
        %v1863 = vpop.f32.mrf.mxu0
        %v1864 = vadd.f32 %v1767, %v1863
        %v1865 = vpop.f32.mrf.mxu0
        %1866 = vmatprep.mubr.bf16.mxu0 %v1062
        %1867 = vmatmul.mubr.bf16.gmra.mxu0 %v1061
        %v1868 = vpop.f32.mrf.mxu0
        %v1869 = vadd.f32 %v1772, %v1868
        %v1870 = vpop.f32.mrf.mxu0
        %v1871 = vpop.f32.mrf.mxu0
        %v1872 = vadd.f32 %v1775, %v1871
        %v1873 = vpop.f32.mrf.mxu0
        %1874 = vmatprep.mubr.bf16.mxu0 %v1070
        %1875 = vmatmul.mubr.bf16.gmra.mxu0 %v1069
        %v1876 = vpop.f32.mrf.mxu0
        %v1877 = vadd.f32 %v1780, %v1876
        %v1878 = vpop.f32.mrf.mxu0
        %v1879 = vpop.f32.mrf.mxu0
        %v1880 = vadd.f32 %v1783, %v1879
        %v1881 = vpop.f32.mrf.mxu0
        %1882 = vdwg.mxu0
        %1883 = vmatprep.subr.bf16.mxu0 0
        %1884 = vmatpush1.bf16.msra.mxu0 %v1519
        %1885 = vmatprep.subr.bf16.mxu0 0
        %1886 = vmatpush1.bf16.msra.mxu0 %v1518
        %1887 = vmatprep.subr.bf16.mxu0 0
        %1888 = vmatpush1.bf16.msra.mxu0 %v1517
        %1889 = vmatprep.subr.bf16.mxu0 0
        %1890 = vmatpush1.bf16.msra.mxu0 %v1516
        %1891 = vmatprep.subr.bf16.mxu0 0
        %1892 = vmatpush1.bf16.msra.mxu0 %v1515
        %1893 = vmatprep.subr.bf16.mxu0 0
        %1894 = vmatpush1.bf16.msra.mxu0 %v1514
        %1895 = vmatprep.subr.bf16.mxu0 0
        %1896 = vmatpush1.bf16.msra.mxu0 %v1513
        %1897 = vmatprep.subr.bf16.mxu0 0
        %1898 = vmatpush1.bf16.msra.mxu0 %v1512
        %1899 = vmatprep.subr.bf16.mxu0 0
        %1900 = vmatpush2.bf16.msra.mxu0 %v1527
        %1901 = vmatprep.subr.bf16.mxu0 0
        %1902 = vmatpush2.bf16.msra.mxu0 %v1526
        %1903 = vmatprep.subr.bf16.mxu0 0
        %1904 = vmatpush2.bf16.msra.mxu0 %v1525
        %1905 = vmatprep.subr.bf16.mxu0 0
        %1906 = vmatpush2.bf16.msra.mxu0 %v1524
        %1907 = vmatprep.subr.bf16.mxu0 0
        %1908 = vmatpush2.bf16.msra.mxu0 %v1523
        %1909 = vmatprep.subr.bf16.mxu0 0
        %1910 = vmatpush2.bf16.msra.mxu0 %v1522
        %1911 = vmatprep.subr.bf16.mxu0 0
        %1912 = vmatpush2.bf16.msra.mxu0 %v1521
        %1913 = vmatprep.subr.bf16.mxu0 0
        %1914 = vmatpush2.bf16.msra.mxu0 %v1520
        %1915 = vmatprep.mubr.bf16.mxu0 %v1016
        %1916 = vmatmul.mubr.bf16.gmra.mxu0 %v1015
        %v1917 = vpop.f32.mrf.mxu0
        %v1918 = vadd.f32 %v1821, %v1917
        %v1919 = vpop.f32.mrf.mxu0
        %v1920 = vpop.f32.mrf.mxu0
        %v1921 = vadd.f32 %v1824, %v1920
        %v1922 = vpop.f32.mrf.mxu0
        %1923 = vmatprep.mubr.bf16.mxu0 %v1024
        %1924 = vmatmul.mubr.bf16.gmra.mxu0 %v1023
        %v1925 = vpop.f32.mrf.mxu0
        %v1926 = vadd.f32 %v1829, %v1925
        %v1927 = vpop.f32.mrf.mxu0
        %v1928 = vpop.f32.mrf.mxu0
        %v1929 = vadd.f32 %v1832, %v1928
        %v1930 = vpop.f32.mrf.mxu0
        %1931 = vmatprep.mubr.bf16.mxu0 %v1032
        %1932 = vmatmul.mubr.bf16.gmra.mxu0 %v1031
        %v1933 = vpop.f32.mrf.mxu0
        %v1934 = vadd.f32 %v1837, %v1933
        %v1935 = vpop.f32.mrf.mxu0
        %v1936 = vpop.f32.mrf.mxu0
        %v1937 = vadd.f32 %v1840, %v1936
        %v1938 = vpop.f32.mrf.mxu0
        %1939 = vmatprep.mubr.bf16.mxu0 %v1040
        %1940 = vmatmul.mubr.bf16.gmra.mxu0 %v1039
        %v1941 = vpop.f32.mrf.mxu0
        %v1942 = vadd.f32 %v1845, %v1941
        %v1943 = vpop.f32.mrf.mxu0
        %v1944 = vpop.f32.mrf.mxu0
        %v1945 = vadd.f32 %v1848, %v1944
        %v1946 = vpop.f32.mrf.mxu0
        %1947 = vmatprep.mubr.bf16.mxu0 %v1048
        %1948 = vmatmul.mubr.bf16.gmra.mxu0 %v1047
        %v1949 = vpop.f32.mrf.mxu0
        %v1950 = vadd.f32 %v1853, %v1949
        %v1951 = vpop.f32.mrf.mxu0
        %v1952 = vpop.f32.mrf.mxu0
        %v1953 = vadd.f32 %v1856, %v1952
        %v1954 = vpop.f32.mrf.mxu0
        %1955 = vmatprep.mubr.bf16.mxu0 %v1056
        %1956 = vmatmul.mubr.bf16.gmra.mxu0 %v1055
        %v1957 = vpop.f32.mrf.mxu0
        %v1958 = vadd.f32 %v1861, %v1957
        %v1959 = vpop.f32.mrf.mxu0
        %v1960 = vpop.f32.mrf.mxu0
        %v1961 = vadd.f32 %v1864, %v1960
        %v1962 = vpop.f32.mrf.mxu0
        %1963 = vmatprep.mubr.bf16.mxu0 %v1064
        %1964 = vmatmul.mubr.bf16.gmra.mxu0 %v1063
        %v1965 = vpop.f32.mrf.mxu0
        %v1966 = vadd.f32 %v1869, %v1965
        %v1967 = vpop.f32.mrf.mxu0
        %v1968 = vpop.f32.mrf.mxu0
        %v1969 = vadd.f32 %v1872, %v1968
        %v1970 = vpop.f32.mrf.mxu0
        %1971 = vmatprep.mubr.bf16.mxu0 %v1072
        %1972 = vmatmul.mubr.bf16.gmra.mxu0 %v1071
        %v1973 = vpop.f32.mrf.mxu0
        %v1974 = vadd.f32 %v1877, %v1973
        %v1975 = vpop.f32.mrf.mxu0
        %v1976 = vpop.f32.mrf.mxu0
        %v1977 = vadd.f32 %v1880, %v1976
        %v1978 = vpop.f32.mrf.mxu0
        %1979 = vdwg.mxu0
        %1980 = vst [vmem:[%s233] sm:$0xff] %v1918
        %1981 = vst [vmem:[%s233 + $0x8] sm:$0xff] %v1921
        %1982 = vst [vmem:[%s233 + $0x10] sm:$0xff] %v1926
        %1983 = vst [vmem:[%s233 + $0x18] sm:$0xff] %v1929
        %1984 = vst [vmem:[%s233 + $0x20] sm:$0xff] %v1934
        %1985 = vst [vmem:[%s233 + $0x28] sm:$0xff] %v1937
        %1986 = vst [vmem:[%s233 + $0x30] sm:$0xff] %v1942
        %1987 = vst [vmem:[%s233 + $0x38] sm:$0xff] %v1945
        %1988 = vst [vmem:[%s233 + $0x40] sm:$0xff] %v1950
        %1989 = vst [vmem:[%s233 + $0x48] sm:$0xff] %v1953
        %1990 = vst [vmem:[%s233 + $0x50] sm:$0xff] %v1958
        %1991 = vst [vmem:[%s233 + $0x58] sm:$0xff] %v1961
        %1992 = vst [vmem:[%s233 + $0x60] sm:$0xff] %v1966
        %1993 = vst [vmem:[%s233 + $0x68] sm:$0xff] %v1969
        %1994 = vst [vmem:[%s233 + $0x70] sm:$0xff] %v1974
        %1995 = vst [vmem:[%s233 + $0x78] sm:$0xff] %v1977
        %s1996 = sand.u32 %s138, 1
        %s1997 = scalar_lea.sflag [#allocation4], %s1996
        %s1998 = sand.u32 %s138, 1
        %s1999 = smul.addr %s1998, 128
        %s2000 = scalar_lea.vmem [#allocation5], %s1999
        // Predicated region
        $region45: #{tpu_custom_call.1} parent=39 // pred_check
          %p2001 = pneg %p148
        $region46: #{tpu_custom_call.1} parent=39 // pred_check_branch
          %2003 = sbr.rel (%p2001) target = $region48
        $region47: #{tpu_custom_call.1} parent=39 // pred_region
          %s2004 = smul.u32 16, %s20
          %s2006 = ssub.s32 2048, 2048
          %2007 = vsyncadd %s1997, %s2006
          %s2008 = smul.addr %s2004, 128
          %s2009 = scalar_lea.hbm %s5, %s2008
          %s2010 = sshll.u32 %s2000, 4
          %s2011 = int_to_ptr.vmem [resolvable:$true] %s2010
          %2016 = dma.vmem_to_hbm [thread:$0]  %s2011, 2048, %s2009, %s1997, 128, 128, 8
        $region48: #{tpu_custom_call.1} parent=39 // pred_fallthru
          _
      $region40: #{tpu_custom_call.1} parent=5 // pred_fallthru
        _
      %p2017 = scmp.le.s32.totalorder 2, %s15
      // Predicated region
      $region49: #{tpu_custom_call.1} parent=5 // pred_check
        %p2018 = pneg %p2017
      $region50: #{tpu_custom_call.1} parent=5 // pred_check_branch
        %2020 = sbr.rel (%p2018) target = $region52
      $region51: #{tpu_custom_call.1} parent=5 // pred_region
        %s2021 = ssub.s32 %s15, 2
        // Predicated region
        $region53: #{tpu_custom_call.1} parent=51 // pred_check
          %p2022 = pneg %p154
        $region54: #{tpu_custom_call.1} parent=51 // pred_check_branch
          %2024 = sbr.rel (%p2022) target = $region56
        $region55: #{tpu_custom_call.1} parent=51 // pred_region
          %s2025 = sand.u32 %s139, 1
          %s2026 = scalar_lea.sflag [#allocation4], %s2025
          %s2027 = sand.u32 %s139, 1
          %s2028 = smul.addr %s2027, 128
          %s2029 = scalar_lea.vmem [#allocation5], %s2028
          %2030 = dma.done %s2026, 2048
        $region56: #{tpu_custom_call.1} parent=51 // pred_fallthru
          _
      $region52: #{tpu_custom_call.1} parent=5 // pred_fallthru
        _
    $region6: #{tpu_custom_call.1} parent=1 // loop_footer
      %s19 = sadd.s32 1, %s15
    $region7: #{tpu_custom_call.1} parent=1 // loop_footer_branch
      %14 = sbr.rel target = $region3
    $region8: #{tpu_custom_call.1} parent=1 // loop_exit
      _
    %2031 = vsyncpa [#allocation3], 1
    %s2032 = scalar_lea.sflag [#allocation3], 1
    %2033 = vsyncpa %s2032, 1
    %2034 = vsyncpa [#allocation4], 1
    %s2035 = scalar_lea.sflag [#allocation4], 1
    %2036 = vsyncpa %s2035, 1

</llo_original>
